<compile_context>
chip_gen: v5e
topology: v5e:2x2
jax: 0.10.0
libtpu: 0.0.40
codegen_flags: <defaults>
</compile_context>

<pallas_src>
import functools
import math

import jax
import jax.numpy as jnp
from jax import lax
from jax.experimental import pallas as pl
from jax.experimental.pallas import tpu as pltpu


def _sine_layer_kernel(x_ref, w_ref, b_ref, o_ref, *, omega_0, matmul_dtype):
    # x_ref: (TB, in_f)      streamed tile (input dtype, usually f32)
    # w_ref: (out_f, in_f)   matmul dtype, PyTorch layout, VMEM-resident
    # b_ref: (1, out_f)      f32, VMEM-resident
    # o_ref: (TB, out_f)     f32, streamed
    x = x_ref[...]
    if matmul_dtype is not None and x.dtype != matmul_dtype:
        x = x.astype(matmul_dtype)          # cheap VPU cast; saves an HBM pass
    y = lax.dot_general(
        x, w_ref[...],
        dimension_numbers=(((1,), (1,)), ((), ())),   # x @ W^T on the MXU
        preferred_element_type=jnp.float32)            # f32 accumulation
    y = y + b_ref[...]                                 # (TB,out)+(1,out), f32
    o_ref[...] = jnp.sin(omega_0 * y).astype(o_ref.dtype)


def sine_layer_forward(x, weight, bias, omega_0=30.0, *,
                       block_b=256, matmul_dtype=jnp.bfloat16):
    """SIREN SineLayer forward: sin(omega_0 * (x @ weight.T + bias)).

    x: (..., in_features); weight: (out_features, in_features);
    bias: (out_features,).  Leading dims of x are flattened into a batch axis
    that is tiled over the grid so x/out stream through double-buffered DMA
    while the small weight & bias stay VMEM-resident (index-mapped to (0,0)
    every step).  For best store performance keep out_features a multiple of
    128.
    """
    orig_shape = x.shape
    in_f = orig_shape[-1]
    out_f, in_f_w = weight.shape
    assert in_f_w == in_f, "weight must be (out_features, in_features)"
    out_dtype = jnp.float32

    x2 = x.reshape(-1, in_f)
    B = x2.shape[0]

    # Weight is tiny and resident -> cast once in the wrapper.
    if matmul_dtype is not None:
        weight = weight.astype(matmul_dtype)
    b2 = bias.astype(jnp.float32).reshape(1, out_f)

    # Batch tile: full extent if small, otherwise a multiple of 8 (sublane).
    # Non-divisible remainders handled by the grid (partial last block).
    tb = B if B <= block_b else max(8, (block_b // 8) * 8)
    grid = (pl.cdiv(B, tb),)

    flops = 2 * B * in_f * out_f
    bytes_accessed = (x2.size * x2.dtype.itemsize
                      + weight.size * weight.dtype.itemsize
                      + b2.size * 4
                      + B * out_f * 4)
    cost = pl.CostEstimate(flops=flops,
                           transcendentals=B * out_f,
                           bytes_accessed=bytes_accessed)

    # TODO(synk): for in_features >~ 1024, add a trailing "arbitrary"
    # K-reduction grid axis with an f32 VMEM accumulator (pl.when
    # init/finalize) so K-slabs of x and W fit the per-tile VMEM budget
    # (esp. v7x's 64 MiB).
    kernel = functools.partial(_sine_layer_kernel,
                               omega_0=float(omega_0),
                               matmul_dtype=matmul_dtype)
    out = pl.pallas_call(
        kernel,
        out_shape=jax.ShapeDtypeStruct((B, out_f), out_dtype),
        grid_spec=pltpu.PrefetchScalarGridSpec(
            num_scalar_prefetch=0,
            grid=grid,
            in_specs=[
                pl.BlockSpec((tb, in_f), lambda i: (i, 0)),      # x: streamed
                pl.BlockSpec((out_f, in_f), lambda i: (0, 0)),   # W: resident
                pl.BlockSpec((1, out_f), lambda i: (0, 0)),      # b: resident
            ],
            out_specs=pl.BlockSpec((tb, out_f), lambda i: (i, 0)),  # streamed
        ),
        compiler_params=pltpu.CompilerParams(
            # Batch tiles are independent -> shardable across both TCs on v7x.
            dimension_semantics=("parallel",)),
        cost_estimate=cost,
    )(x2, weight, b2)

    return out.reshape(orig_shape[:-1] + (out_f,))


def init_sine_layer_params(key, in_features, out_features, is_first=False,
                           omega_0=30.0, dtype=jnp.float32):
    """Deterministic init matching SineLayer.init_weights semantics."""
    kw, kb = jax.random.split(key)
    if is_first:
        bound_w = 1.0 / in_features
    else:
        bound_w = math.sqrt(6.0 / in_features) / omega_0
    weight = jax.random.uniform(
        kw, (out_features, in_features), dtype=dtype,
        minval=-bound_w, maxval=bound_w)
    # bias keeps nn.Linear's default init: U(-1/sqrt(in), 1/sqrt(in))
    bound_b = 1.0 / math.sqrt(in_features)
    bias = jax.random.uniform(
        kb, (out_features,), dtype=dtype, minval=-bound_b, maxval=bound_b)
    return weight, bias


if __name__ == "__main__":
    key = jax.random.PRNGKey(0)
    k_x, k_p = jax.random.split(key)

    batch = 512          # tiled into 4 batch tiles of 128 rows
    in_features = 64
    out_features = 128   # multiple of 128 -> lane-dense unmasked stores
    omega_0 = 30.0

    x = jax.random.uniform(k_x, (batch, in_features), dtype=jnp.float32,
                           minval=-1.0, maxval=1.0)
    weight, bias = init_sine_layer_params(
        k_p, in_features, out_features, is_first=True, omega_0=omega_0)

    out = sine_layer_forward(x, weight, bias, omega_0=omega_0, block_b=128)
    out = jax.block_until_ready(out)

    # Reference with the same dtype policy (bf16 matmul operands, f32 accum,
    # f32 bias / scale / sin) in plain JAX.
    xb = x.astype(jnp.bfloat16)
    wb = weight.astype(jnp.bfloat16)
    y_ref = jnp.dot(xb, wb.T, preferred_element_type=jnp.float32) + bias
    ref = jnp.sin(omega_0 * y_ref)

    assert out.shape == (batch, out_features)
    assert out.dtype == jnp.float32
    assert jnp.allclose(out, ref, atol=1e-4, rtol=1e-4), \
        float(jnp.max(jnp.abs(out - ref)))

    print("KERNEL_OK")
</pallas_src>

<mosaic_0001>
module attributes {stable_mosaic.version = 11 : i64} {
  func.func @_sine_layer_kernel(%arg0: i32, %arg1: memref<128x64xf32, #tpu.memory_space<vmem>>, %arg2: memref<128x64xbf16, #tpu.memory_space<vmem>>, %arg3: memref<1x128xf32, #tpu.memory_space<vmem>>, %arg4: memref<128x128xf32, #tpu.memory_space<vmem>>) attributes {dimension_semantics = [#tpu.dimension_semantics<parallel>], iteration_bounds = array<i64: 4>, scalar_prefetch = 0 : i64, scratch_operands = 0 : i64, tpu.core_type = #tpu.core_type<tc>, window_params = [{transform_indices = @transform_0, window_bounds = array<i64: 128, 64>}, {pipeline_mode = #tpu.pipeline_mode<synchronous>, transform_indices = @transform_1, window_bounds = array<i64: 128, 64>}, {pipeline_mode = #tpu.pipeline_mode<synchronous>, transform_indices = @transform_2, window_bounds = array<i64: 1, 128>}, {transform_indices = @transform_3, window_bounds = array<i64: 128, 128>}]} {
    %c0 = arith.constant 0 : index
    %c0_0 = arith.constant 0 : index
    %0 = vector.load %arg1[%c0, %c0_0] : memref<128x64xf32, #tpu.memory_space<vmem>>, vector<128x64xf32>
    %1 = arith.truncf %0 : vector<128x64xf32> to vector<128x64xbf16>
    %c0_1 = arith.constant 0 : index
    %c0_2 = arith.constant 0 : index
    %2 = vector.load %arg2[%c0_1, %c0_2] : memref<128x64xbf16, #tpu.memory_space<vmem>>, vector<128x64xbf16>
    %cst = arith.constant dense<0.000000e+00> : vector<128x128xf32>
    %3 = tpu.matmul %1, %2, %cst {dimension_numbers = #tpu.dot_dimension_numbers<[1], [1], [0], [0], [0, 0, 1, 0], [], []>} : vector<128x64xbf16>, vector<128x64xbf16>, vector<128x128xf32> -> vector<128x128xf32>
    %c0_3 = arith.constant 0 : index
    %c0_4 = arith.constant 0 : index
    %4 = vector.load %arg3[%c0_3, %c0_4] : memref<1x128xf32, #tpu.memory_space<vmem>>, vector<1x128xf32>
    %5 = vector.broadcast %4 : vector<1x128xf32> to vector<128x128xf32>
    %6 = arith.addf %3, %5 : vector<128x128xf32>
    %cst_5 = arith.constant 3.000000e+01 : f32
    %7 = vector.broadcast %cst_5 : f32 to vector<128x128xf32>
    %8 = arith.mulf %7, %6 : vector<128x128xf32>
    %9 = math.sin %8 : vector<128x128xf32>
    %c0_6 = arith.constant 0 : index
    %c0_7 = arith.constant 0 : index
    %10 = vector.load %arg4[%c0_6, %c0_7] : memref<128x128xf32, #tpu.memory_space<vmem>>, vector<128x128xf32>
    tpu.vector_store %arg4[%c0_6, %c0_7], %9 {strides = array<i32>} : memref<128x128xf32, #tpu.memory_space<vmem>>, vector<128x128xf32>,
    return
  }
  func.func @transform_0(%arg0: i32) -> (i32, i32) {
    %c0_i32 = arith.constant 0 : i32
    %c0_i32_0 = arith.constant 0 : i32
    return %arg0, %c0_i32 : i32, i32
  }
  func.func @transform_1(%arg0: i32) -> (i32, i32) {
    %c0_i32 = arith.constant 0 : i32
    %c0_i32_0 = arith.constant 0 : i32
    %c0_i32_1 = arith.constant 0 : i32
    return %c0_i32, %c0_i32_0 : i32, i32
  }
  func.func @transform_2(%arg0: i32) -> (i32, i32) {
    %c0_i32 = arith.constant 0 : i32
    %c0_i32_0 = arith.constant 0 : i32
    %c0_i32_1 = arith.constant 0 : i32
    return %c0_i32, %c0_i32_0 : i32, i32
  }
  func.func @transform_3(%arg0: i32) -> (i32, i32) {
    %c0_i32 = arith.constant 0 : i32
    %c0_i32_0 = arith.constant 0 : i32
    return %arg0, %c0_i32 : i32, i32
  }
}

</mosaic_0001>

<llo_original>
// kernel: tpu_custom_call.1
$region0: #{tpu_custom_call.1}
  #allocation0 [shape = 'u32[]', space=smem, size = 0x4, offset = 0x4, fixed_abs, tag = 'smem constant byte address 0x4 - core index']
  #allocation1 [shape = 'u32[72,128]{1,0:T(1,128)}', space=vmem, size = 0x9000, scoped, tag = 'internal scratch']
  %s0 = inlined_call_operand.vmem [shape: f32[512,64], index: 0, kind: input, shape index: {}]
  %s1 = inlined_call_operand.vmem [shape: bf16[128,64], index: 1, kind: input, shape index: {}]
  %s2 = inlined_call_operand.vmem [shape: f32[1,128], index: 2, kind: input, shape index: {}]
  %s3 = inlined_call_operand.hbm [shape: f32[512,128], index: 3, kind: output, shape index: {}]
  %s4 = sld [smem:[#allocation0]]
  $region45: #{tpu_custom_call.1} parent=0
    _
  %s6 = ssub.s32 1, %s4
  %s7 = scalar_select 0, %s6, %s4
  $region1: #{tpu_custom_call.1} parent=0
    #allocation2 [shape = 'u8[131072]{0}', space=vmem, size = 0x20000, scoped, tag = 'output window, operand 0']
    #allocation3 [shape = 's32[2]{0}', space=sflag, size = 0x8, scoped, tag = 'scoped memory for tpu_custom_call.1']
    %8 = vsyncpa [#allocation3], 0
    %s9 = scalar_lea.sflag [#allocation3], 1
    %10 = vsyncpa %s9, 0
    loop: start=0, step=1, limit=6
    $region2: #{tpu_custom_call.1} parent=1 // loop_pre_header
      _
    $region3: #{tpu_custom_call.1} parent=1 // loop_header
      %s12 = sphi 0, %s16
      %p13 = scmp.ge.s32.totalorder %s12, 6
      %s22 = sphi 0, %s24
      %s25 = sphi 0, %s22
      %s26 = sphi 0, %s25
      %s42 = sphi 0, %s26
      %s46 = sphi 0, %s46
      %s48 = sphi 0, %s46
      %s49 = sphi 0, %s48
      %s63 = sphi 0, %s49
      %s67 = sphi 0, %s67
      %s69 = sphi 0, %s67
      %s70 = sphi 0, %s69
      %s84 = sphi 0, %s70
      %s90 = sphi 0, %s92
      %s93 = sphi 0, %s90
      %s94 = sphi 0, %s93
      %s110 = sphi 0, %s94
    $region4: #{tpu_custom_call.1} parent=1 // loop_header_branch
      %15 = sbr.rel (%p13) target = $region8
    $region5: #{tpu_custom_call.1} parent=1 // loop_body
      %s17 = ssub.s32 %s12, 1
      %s18 = ssub.s32 %s12, 2
      %s19 = sadd.s32 %s12, 1
      %s20 = ssub.s32 %s12, %s19
      %p21 = scmp.eq.s32.totalorder %s20, 0
      %s23 = sadd.s32 %s22, 1
      %s24 = scalar_select %p21, %s22, %s23
      %p27 = pneg %p21
      %p28 = scmp.eq.s32.totalorder %s12, 3
      %p29 = por %p27, %p28
      %p30 = scmp.ne.s32.totalorder %s22, %s25
      %p31 = scmp.eq.s32.totalorder %s12, 0
      %p32 = por %p30, %p31
      %p33 = scmp.ne.s32.totalorder %s22, %s25
      %p34 = scmp.eq.s32.totalorder %s17, 3
      %p35 = por %p33, %p34
      %p36 = scmp.ne.s32.totalorder %s25, %s26
      %p37 = scmp.eq.s32.totalorder %s17, 0
      %p38 = por %p36, %p37
      %p39 = scmp.ne.s32.totalorder %s25, %s26
      %p40 = scmp.eq.s32.totalorder %s18, 3
      %p41 = por %p39, %p40
      %p43 = scmp.ne.s32.totalorder %s26, %s42
      %p44 = scmp.eq.s32.totalorder %s18, 0
      %p45 = por %p43, %p44
      %s47 = sadd.s32 %s46, 1
      %p50 = scmp.eq.s32.totalorder %s12, 3
      %p51 = scmp.ne.s32.totalorder %s46, %s48
      %p52 = scmp.eq.s32.totalorder %s12, 0
      %p53 = por %p51, %p52
      %p54 = scmp.ne.s32.totalorder %s46, %s48
      %p55 = scmp.eq.s32.totalorder %s17, 3
      %p56 = por %p54, %p55
      %p57 = scmp.ne.s32.totalorder %s48, %s49
      %p58 = scmp.eq.s32.totalorder %s17, 0
      %p59 = por %p57, %p58
      %p60 = scmp.ne.s32.totalorder %s48, %s49
      %p61 = scmp.eq.s32.totalorder %s18, 3
      %p62 = por %p60, %p61
      %p64 = scmp.ne.s32.totalorder %s49, %s63
      %p65 = scmp.eq.s32.totalorder %s18, 0
      %p66 = por %p64, %p65
      %s68 = sadd.s32 %s67, 1
      %p71 = scmp.eq.s32.totalorder %s12, 3
      %p72 = scmp.ne.s32.totalorder %s67, %s69
      %p73 = scmp.eq.s32.totalorder %s12, 0
      %p74 = por %p72, %p73
      %p75 = scmp.ne.s32.totalorder %s67, %s69
      %p76 = scmp.eq.s32.totalorder %s17, 3
      %p77 = por %p75, %p76
      %p78 = scmp.ne.s32.totalorder %s69, %s70
      %p79 = scmp.eq.s32.totalorder %s17, 0
      %p80 = por %p78, %p79
      %p81 = scmp.ne.s32.totalorder %s69, %s70
      %p82 = scmp.eq.s32.totalorder %s18, 3
      %p83 = por %p81, %p82
      %p85 = scmp.ne.s32.totalorder %s70, %s84
      %p86 = scmp.eq.s32.totalorder %s18, 0
      %p87 = por %p85, %p86
      %s88 = ssub.s32 %s12, %s19
      %p89 = scmp.eq.s32.totalorder %s88, 0
      %s91 = sadd.s32 %s90, 1
      %s92 = scalar_select %p89, %s90, %s91
      %p95 = pneg %p89
      %p96 = scmp.eq.s32.totalorder %s12, 3
      %p97 = por %p95, %p96
      %p98 = scmp.ne.s32.totalorder %s90, %s93
      %p99 = scmp.eq.s32.totalorder %s12, 0
      %p100 = por %p98, %p99
      %p101 = scmp.ne.s32.totalorder %s90, %s93
      %p102 = scmp.eq.s32.totalorder %s17, 3
      %p103 = por %p101, %p102
      %p104 = scmp.ne.s32.totalorder %s93, %s94
      %p105 = scmp.eq.s32.totalorder %s17, 0
      %p106 = por %p104, %p105
      %p107 = scmp.ne.s32.totalorder %s93, %s94
      %p108 = scmp.eq.s32.totalorder %s18, 3
      %p109 = por %p107, %p108
      %p111 = scmp.ne.s32.totalorder %s94, %s110
      %p112 = scmp.eq.s32.totalorder %s18, 0
      %p113 = por %p111, %p112
      %p114 = scmp.le.s32.totalorder 1, %s12
      %p115 = scmp.lt.s32.totalorder %s12, 5
      %p116 = pnand %p114, %p115
      %p117 = pneg %p116
      // Predicated region
      $region9: #{tpu_custom_call.1} parent=5 // pred_check
        _
      $region10: #{tpu_custom_call.1} parent=5 // pred_check_branch
        %119 = sbr.rel (%p116) target = $region12
      $region11: #{tpu_custom_call.1} parent=5 // pred_region
        %s120 = ssub.s32 %s12, 1
        // Predicated region
        $region13: #{tpu_custom_call.1} parent=11 // pred_check
          %p121 = pneg %p59
        $region14: #{tpu_custom_call.1} parent=11 // pred_check_branch
          %123 = sbr.rel (%p121) target = $region16
        $region15: #{tpu_custom_call.1} parent=11 // pred_region
          _
        $region16: #{tpu_custom_call.1} parent=11 // pred_fallthru
          _
        // Predicated region
        $region17: #{tpu_custom_call.1} parent=11 // pred_check
          %p124 = pneg %p80
        $region18: #{tpu_custom_call.1} parent=11 // pred_check_branch
          %126 = sbr.rel (%p124) target = $region20
        $region19: #{tpu_custom_call.1} parent=11 // pred_region
          _
        $region20: #{tpu_custom_call.1} parent=11 // pred_fallthru
          _
      $region12: #{tpu_custom_call.1} parent=5 // pred_fallthru
        _
      %p127 = scmp.lt.s32.totalorder %s12, 4
      // Predicated region
      $region21: #{tpu_custom_call.1} parent=5 // pred_check
        %p128 = pneg %p127
      $region22: #{tpu_custom_call.1} parent=5 // pred_check_branch
        %130 = sbr.rel (%p128) target = $region24
      $region23: #{tpu_custom_call.1} parent=5 // pred_region
        // Predicated region
        $region25: #{tpu_custom_call.1} parent=23 // pred_check
          %p131 = pneg %p32
        $region26: #{tpu_custom_call.1} parent=23 // pred_check_branch
          %133 = sbr.rel (%p131) target = $region28
        $region27: #{tpu_custom_call.1} parent=23 // pred_region
          %s134 = smul.u32 16, %s12
          %p135 = scmp.lt.s32.totalorder %s134, 63
          %s136 = scalar_select %p135, %s134, 63
          %s137 = smul.addr %s136, 8
          %s138 = scalar_lea.vmem %s0, %s137
          %s139 = smul.u32 16, %s12
        $region28: #{tpu_custom_call.1} parent=23 // pred_fallthru
          _
      $region24: #{tpu_custom_call.1} parent=5 // pred_fallthru
        _
      %p140 = scmp.le.s32.totalorder 1, %s12
      %p141 = scmp.lt.s32.totalorder %s12, 5
      %p142 = pnand %p140, %p141
      %p143 = pneg %p142
      // Predicated region
      $region29: #{tpu_custom_call.1} parent=5 // pred_check
        _
      $region30: #{tpu_custom_call.1} parent=5 // pred_check_branch
        %145 = sbr.rel (%p142) target = $region32
      $region31: #{tpu_custom_call.1} parent=5 // pred_region
        %s146 = ssub.s32 %s12, 1
        %s147 = smul.u32 16, %s17
        %p148 = scmp.lt.s32.totalorder %s147, 63
        %s149 = scalar_select %p148, %s147, 63
        %s150 = smul.addr %s149, 8
        %s151 = scalar_lea.vmem %s0, %s150
        %p152 = pneg %p38
        %p153 = pneg %p35
        %p154 = pneg %p59
        %p155 = pneg %p56
        %p156 = pneg %p80
        %p157 = pneg %p77
        %p158 = pneg %p106
        %p159 = pneg %p103
        %s160 = sand.u32 %s93, 1
        %s161 = scalar_lea.sflag [#allocation3], %s160
        %s162 = sand.u32 %s93, 1
        %s163 = smul.addr %s162, 128
        %s164 = scalar_lea.vmem [#allocation2], %s163
        %s165 = smul.u32 16, %s17
        %p166 = scmp.lt.s32.totalorder %s165, 63
        %s167 = scalar_select %p166, %s165, 63
        %s168 = smul.addr %s167, 8
        %s169 = scalar_lea.vmem %s0, %s168
        %s170 = smul.u32 16, %s17
        %s171 = smul.u32 16, %s17
        %v172 = vld [vmem:[%s169] sm:$0xff]
        %v173 = vld [vmem:[%s169 + $0x8] sm:$0xff]
        %v174 = vld [vmem:[%s169 + $0x10] sm:$0xff]
        %v175 = vld [vmem:[%s169 + $0x18] sm:$0xff]
        %v176 = vld [vmem:[%s169 + $0x20] sm:$0xff]
        %v177 = vld [vmem:[%s169 + $0x28] sm:$0xff]
        %v178 = vld [vmem:[%s169 + $0x30] sm:$0xff]
        %v179 = vld [vmem:[%s169 + $0x38] sm:$0xff]
        %v180 = vld [vmem:[%s169 + $0x40] sm:$0xff]
        %v181 = vld [vmem:[%s169 + $0x48] sm:$0xff]
        %v182 = vld [vmem:[%s169 + $0x50] sm:$0xff]
        %v183 = vld [vmem:[%s169 + $0x58] sm:$0xff]
        %v184 = vld [vmem:[%s169 + $0x60] sm:$0xff]
        %v185 = vld [vmem:[%s169 + $0x68] sm:$0xff]
        %v186 = vld [vmem:[%s169 + $0x70] sm:$0xff]
        %v187 = vld [vmem:[%s169 + $0x78] sm:$0xff]
        %v188 = vpack.c.bf16 %v173, %v172
        %v189 = vpack.c.bf16 %v175, %v174
        %v190 = vpack.c.bf16 %v177, %v176
        %v191 = vpack.c.bf16 %v179, %v178
        %v192 = vpack.c.bf16 %v181, %v180
        %v193 = vpack.c.bf16 %v183, %v182
        %v194 = vpack.c.bf16 %v185, %v184
        %v195 = vpack.c.bf16 %v187, %v186
        %v196 = vld [vmem:[%s1] sm:$0xf]
        %v197 = vld [vmem:[%s1 + $0x4] sm:$0xf]
        %v198 = vld [vmem:[%s1 + $0x8] sm:$0xf]
        %v199 = vld [vmem:[%s1 + $0xc] sm:$0xf]
        %v200 = vld [vmem:[%s1 + $0x10] sm:$0xf]
        %v201 = vld [vmem:[%s1 + $0x14] sm:$0xf]
        %v202 = vld [vmem:[%s1 + $0x18] sm:$0xf]
        %v203 = vld [vmem:[%s1 + $0x1c] sm:$0xf]
        %v204 = vld [vmem:[%s1 + $0x20] sm:$0xf]
        %v205 = vld [vmem:[%s1 + $0x24] sm:$0xf]
        %v206 = vld [vmem:[%s1 + $0x28] sm:$0xf]
        %v207 = vld [vmem:[%s1 + $0x2c] sm:$0xf]
        %v208 = vld [vmem:[%s1 + $0x30] sm:$0xf]
        %v209 = vld [vmem:[%s1 + $0x34] sm:$0xf]
        %v210 = vld [vmem:[%s1 + $0x38] sm:$0xf]
        %v211 = vld [vmem:[%s1 + $0x3c] sm:$0xf]
        %v212 = vld [vmem:[%s2] sm:$0x1]
        %v214 = vperm.slane %v212, 0
        %v232 = vunpack.c.l.b16 %v196
        %v233 = vunpack.c.l.b16 %v197
        %v234 = vunpack.c.l.b16 %v198
        %v235 = vunpack.c.l.b16 %v199
        %v236 = vunpack.c.l.b16 %v200
        %v237 = vunpack.c.l.b16 %v201
        %v238 = vunpack.c.l.b16 %v202
        %v239 = vunpack.c.l.b16 %v203
        %v240 = vunpack.c.l.b16 %v204
        %v241 = vunpack.c.l.b16 %v205
        %v242 = vunpack.c.l.b16 %v206
        %v243 = vunpack.c.l.b16 %v207
        %v244 = vunpack.c.l.b16 %v208
        %v245 = vunpack.c.l.b16 %v209
        %v246 = vunpack.c.l.b16 %v210
        %v247 = vunpack.c.l.b16 %v211
        %v248 = vpack.c.b16 %v233, %v232
        %v249 = vpack.c.b16 %v235, %v234
        %v250 = vpack.c.b16 %v237, %v236
        %v251 = vpack.c.b16 %v239, %v238
        %v252 = vpack.c.b16 %v241, %v240
        %v253 = vpack.c.b16 %v243, %v242
        %v254 = vpack.c.b16 %v245, %v244
        %v255 = vpack.c.b16 %v247, %v246
        %vm256 = vcmask 523264
        %v258 = vsel %vm256, %v188, 0
        %v261 = vsel %vm256, %v189, 0
        %v264 = vsel %vm256, %v190, 0
        %v267 = vsel %vm256, %v191, 0
        %v270 = vsel %vm256, %v192, 0
        %v273 = vsel %vm256, %v193, 0
        %v276 = vsel %vm256, %v194, 0
        %v279 = vsel %vm256, %v195, 0
        %v282 = vsel %vm256, %v248, 0
        %v285 = vsel %vm256, %v249, 0
        %v288 = vsel %vm256, %v250, 0
        %v291 = vsel %vm256, %v251, 0
        %v294 = vsel %vm256, %v252, 0
        %v297 = vsel %vm256, %v253, 0
        %v300 = vsel %vm256, %v254, 0
        %v303 = vsel %vm256, %v255, 0
        %305 = vmatpush.bf16.xpose.msra.mxu0 %v303
        %306 = vmatpush.bf16.xpose.msra.mxu0 %v300
        %307 = vmatpush.bf16.xpose.msra.mxu0 %v297
        %308 = vmatpush.bf16.xpose.msra.mxu0 %v294
        %309 = vmatpush.bf16.xpose.msra.mxu0 %v291
        %310 = vmatpush.bf16.xpose.msra.mxu0 %v288
        %311 = vmatpush.bf16.xpose.msra.mxu0 %v285
        %312 = vmatpush.bf16.xpose.msra.mxu0 %v282
        %313 = vmatmul.bf16.gmra.mxu0 %v258
        %v314 = vpop.f32.mrf.mxu0
        %v315 = vadd.f32 %v214, %v314
        %v316 = vpop.f32.mrf.mxu0
        %v317 = vadd.f32 %v214, %v316
        %318 = vmatmul.bf16.gmra.mxu0 %v261
        %v319 = vpop.f32.mrf.mxu0
        %v320 = vadd.f32 %v214, %v319
        %v321 = vpop.f32.mrf.mxu0
        %v322 = vadd.f32 %v214, %v321
        %323 = vmatmul.bf16.gmra.mxu0 %v264
        %v324 = vpop.f32.mrf.mxu0
        %v325 = vadd.f32 %v214, %v324
        %v326 = vpop.f32.mrf.mxu0
        %v327 = vadd.f32 %v214, %v326
        %328 = vmatmul.bf16.gmra.mxu0 %v267
        %v329 = vpop.f32.mrf.mxu0
        %v330 = vadd.f32 %v214, %v329
        %v331 = vpop.f32.mrf.mxu0
        %v332 = vadd.f32 %v214, %v331
        %333 = vmatmul.bf16.gmra.mxu0 %v270
        %v334 = vpop.f32.mrf.mxu0
        %v335 = vadd.f32 %v214, %v334
        %v336 = vpop.f32.mrf.mxu0
        %v337 = vadd.f32 %v214, %v336
        %338 = vmatmul.bf16.gmra.mxu0 %v273
        %v339 = vpop.f32.mrf.mxu0
        %v340 = vadd.f32 %v214, %v339
        %v341 = vpop.f32.mrf.mxu0
        %v342 = vadd.f32 %v214, %v341
        %343 = vmatmul.bf16.gmra.mxu0 %v276
        %v344 = vpop.f32.mrf.mxu0
        %v345 = vadd.f32 %v214, %v344
        %v346 = vpop.f32.mrf.mxu0
        %v347 = vadd.f32 %v214, %v346
        %348 = vmatmul.bf16.gmra.mxu0 %v279
        %v349 = vpop.f32.mrf.mxu0
        %v350 = vadd.f32 %v214, %v349
        %v351 = vpop.f32.mrf.mxu0
        %v352 = vadd.f32 %v214, %v351
        %353 = vdwg.mxu0
        %v354 = vmul.f32 %v315, 30.0
        %v355 = vmul.f32 %v317, 30.0
        %v356 = vmul.f32 %v320, 30.0
        %v357 = vmul.f32 %v322, 30.0
        %v358 = vmul.f32 %v325, 30.0
        %v359 = vmul.f32 %v327, 30.0
        %v360 = vmul.f32 %v330, 30.0
        %v361 = vmul.f32 %v332, 30.0
        %v362 = vmul.f32 %v335, 30.0
        %v363 = vmul.f32 %v337, 30.0
        %v364 = vmul.f32 %v340, 30.0
        %v365 = vmul.f32 %v342, 30.0
        %v366 = vmul.f32 %v345, 30.0
        %v367 = vmul.f32 %v347, 30.0
        %v368 = vmul.f32 %v350, 30.0
        %v369 = vmul.f32 %v352, 30.0
        %v370 = vand.u32 2147483647, %v354
        %vm371 = vcmp.le.f32.partialorder %v370, 0.7853982
        %vm372 = vcmp.lt.s32.totalorder %v354, 0
        %v373 = vand.u32 %v354, 2139095040
        %v374 = vshrl.u32 %v373, 23
        %v375 = vsub.s32 %v374, 127
        %v376 = vand.u32 2147483647, %v354
        %v377 = vand.u32 %v376, 8388607
        %v378 = vor.u32 %v377, 8388608
        %v379 = vsub.s32 0, %v378
        %v380 = vadd.s32 %v375, 1
        %vm381 = vcmp.gt.s32.totalorder %v380, 0
        %v382 = vsel %vm381, %v380, 0
        %v383 = vshrl.u32 %v382, 5
        %v384 = vand.u32 %v382, 31
        %v385 = vsub.s32 32, %v384
        %v386 = vshrl.u32 683565275, %v385
        %v387 = vshll.u32 683565275, %v384
        %v388 = vshrl.u32 2475754826, %v385
        %v389 = vor.u32 %v387, %v388
        %v390 = vshll.u32 2475754826, %v384
        %v391 = vshrl.u32 2131351028, %v385
        %v392 = vor.u32 %v390, %v391
        %v393 = vshll.u32 2131351028, %v384
        %v394 = vshrl.u32 2102212464, %v385
        %v395 = vor.u32 %v393, %v394
        %v396 = vshll.u32 2102212464, %v384
        %v397 = vshrl.u32 920167782, %v385
        %v398 = vor.u32 %v396, %v397
        %v399 = vshll.u32 920167782, %v384
        %v400 = vshrl.u32 1326507024, %v385
        %v401 = vor.u32 %v399, %v400
        %vm402 = vcmp.lt.s32.totalorder %v383, 1
        %vm403 = vcmp.lt.s32.totalorder %v383, 2
        %vm404 = vcmp.lt.s32.totalorder %v383, 3
        %vm405 = vcmp.lt.s32.totalorder %v383, 4
        %v406 = vsel %vm402, %v386, %v389
        %v407 = vsel %vm405, %v395, 2102212464
        %v408 = vsel %vm404, %v392, %v407
        %v409 = vsel %vm403, %v406, %v408
        %v410 = vsel %vm402, %v389, %v392
        %v411 = vsel %vm405, %v398, 920167782
        %v412 = vsel %vm404, %v395, %v411
        %v413 = vsel %vm403, %v410, %v412
        %v414 = vsel %vm402, %v392, %v395
        %v415 = vsel %vm405, %v401, 1326507024
        %v416 = vsel %vm404, %v398, %v415
        %v417 = vsel %vm403, %v414, %v416
        %v418 = vshll.u32 %v378, 8
        %v419 = vand.u32 %v418, 65535
        %v420 = vshrl.u32 %v418, 16
        %v421 = vand.u32 %v417, 65535
        %v422 = vshrl.u32 %v417, 16
        %v423 = vmul.u32 %v419, %v421
        %v424 = vmul.u32 %v419, %v422
        %v425 = vmul.u32 %v420, %v421
        %v426 = vmul.u32 %v420, %v422
        %v427 = vshll.u32 %v424, 16
        %v428 = vshrl.u32 %v424, 16
        %v429 = vshll.u32 %v425, 16
        %v430 = vshrl.u32 %v425, 16
        %vm431 = vc.u32 %v423, %v427
        %v432 = vsel %vm431, 1, 0
        %v433 = vadd.s32 %v423, %v427
        %v434 = vadd.s32 %v426, %v432
        %vm435 = vc.u32 %v433, %v429
        %v436 = vsel %vm435, 1, 0
        %v437 = vadd.s32 %v433, %v429
        %v438 = vadd.s32 %v434, %v436
        %v439 = vadd.s32 %v438, %v428
        %v440 = vadd.s32 %v439, %v430
        %v441 = vand.u32 %v418, 65535
        %v442 = vshrl.u32 %v418, 16
        %v443 = vand.u32 %v413, 65535
        %v444 = vshrl.u32 %v413, 16
        %v445 = vmul.u32 %v441, %v443
        %v446 = vmul.u32 %v441, %v444
        %v447 = vmul.u32 %v442, %v443
        %v448 = vmul.u32 %v442, %v444
        %v449 = vshll.u32 %v446, 16
        %v450 = vshrl.u32 %v446, 16
        %v451 = vshll.u32 %v447, 16
        %v452 = vshrl.u32 %v447, 16
        %vm453 = vc.u32 %v445, %v449
        %v454 = vsel %vm453, 1, 0
        %v455 = vadd.s32 %v445, %v449
        %v456 = vadd.s32 %v448, %v454
        %vm457 = vc.u32 %v455, %v451
        %v458 = vsel %vm457, 1, 0
        %v459 = vadd.s32 %v455, %v451
        %v460 = vadd.s32 %v456, %v458
        %v461 = vadd.s32 %v460, %v450
        %v462 = vadd.s32 %v461, %v452
        %v463 = vmul.u32 %v418, %v409
        %v464 = vadd.s32 %v440, %v459
        %vm465 = vc.u32 %v440, %v459
        %v466 = vadd.s32 %v462, 1
        %v467 = vsel %vm465, %v466, %v462
        %v468 = vadd.s32 %v463, %v467
        %v469 = vadd.s32 %v468, 536870912
        %v470 = vshrl.u32 %v469, 30
        %v471 = vshll.u32 %v470, 30
        %v472 = vsub.s32 %v468, %v471
        %vm473 = vcmp.lt.s32.totalorder %v472, 0
        %v474 = vsub.s32 0, %v472
        %v475 = vsel %vm473, %v474, %v472
        %v476 = vclz %v475
        %v477 = vsub.s32 %v476, 2
        %vm478 = vcmp.gt.s32.totalorder 0, %v477
        %v479 = vsel %vm478, 0, %v477
        %v480 = vsub.s32 32, %v479
        %v481 = vshll.u32 %v472, %v479
        %v482 = vshrl.u32 %v464, %v480
        %v483 = vor.u32 %v481, %v482
        %v484 = vsub.s32 4294967266, %v479
        %v485 = vadd.s32 %v484, 127
        %v486 = vshll.u32 %v485, 23
        %v487 = vor.u32 4788187, %v486
        %v488 = vand.u32 2147483647, %v487
        %v490 = vcvt.s32.f32 %v483
        %v491 = vmul.f32 %v490, %v488
        %v492 = vxor.u32 %v491, 2147483648
        %v493 = vsel %vm372, %v492, %v491
        %v494 = vsub.s32 4, %v470
        %v495 = vsel %vm372, %v494, %v470
        %v496 = vsel %vm371, %v354, %v493
        %v497 = vsel %vm371, 0, %v495
        %v498 = vmul.f32 %v496, %v496
        %v499 = vmul.f32 %v498, -0.001358992
        %v500 = vadd.f32 %v499, 0.041655596
        %v501 = vmul.f32 %v498, %v500
        %v502 = vadd.f32 %v501, -0.4999988
        %v503 = vmul.f32 %v498, %v502
        %v504 = vadd.f32 1.0, %v503
        %v505 = vmul.f32 %v496, %v496
        %v506 = vmul.f32 %v505, -0.00019511016
        %v507 = vadd.f32 %v506, 0.008332121
        %v508 = vmul.f32 %v505, %v507
        %v509 = vadd.f32 %v508, -0.16666654
        %v510 = vmul.f32 %v505, %v509
        %v511 = vadd.f32 %v510, 1.0
        %v512 = vmul.f32 %v511, %v496
        %vm513 = vweird.f32 %v354
        %v514 = vadd.s32 %v497, 3
        %v515 = vand.u32 %v514, 3
        %vm516 = vcmp.lt.s32.totalorder %v515, 2
        %vm517 = vcmp.eq.s32.totalorder %v515, 0
        %v518 = vxor.u32 %v512, 2147483648
        %v519 = vsel %vm517, %v504, %v518
        %vm520 = vcmp.eq.s32.totalorder %v515, 2
        %v521 = vxor.u32 %v504, 2147483648
        %v522 = vsel %vm520, %v521, %v512
        %v523 = vsel %vm516, %v519, %v522
        %v524 = vsel %vm513, nan, %v523
        %v525 = vand.u32 2147483647, %v355
        %vm526 = vcmp.le.f32.partialorder %v525, 0.7853982
        %vm527 = vcmp.lt.s32.totalorder %v355, 0
        %v528 = vand.u32 %v355, 2139095040
        %v529 = vshrl.u32 %v528, 23
        %v530 = vsub.s32 %v529, 127
        %v531 = vand.u32 2147483647, %v355
        %v532 = vand.u32 %v531, 8388607
        %v533 = vor.u32 %v532, 8388608
        %v534 = vsub.s32 0, %v533
        %v535 = vadd.s32 %v530, 1
        %vm536 = vcmp.gt.s32.totalorder %v535, 0
        %v537 = vsel %vm536, %v535, 0
        %v538 = vshrl.u32 %v537, 5
        %v539 = vand.u32 %v537, 31
        %v540 = vsub.s32 32, %v539
        %v541 = vshrl.u32 683565275, %v540
        %v542 = vshll.u32 683565275, %v539
        %v543 = vshrl.u32 2475754826, %v540
        %v544 = vor.u32 %v542, %v543
        %v545 = vshll.u32 2475754826, %v539
        %v546 = vshrl.u32 2131351028, %v540
        %v547 = vor.u32 %v545, %v546
        %v548 = vshll.u32 2131351028, %v539
        %v549 = vshrl.u32 2102212464, %v540
        %v550 = vor.u32 %v548, %v549
        %v551 = vshll.u32 2102212464, %v539
        %v552 = vshrl.u32 920167782, %v540
        %v553 = vor.u32 %v551, %v552
        %v554 = vshll.u32 920167782, %v539
        %v555 = vshrl.u32 1326507024, %v540
        %v556 = vor.u32 %v554, %v555
        %vm557 = vcmp.lt.s32.totalorder %v538, 1
        %vm558 = vcmp.lt.s32.totalorder %v538, 2
        %vm559 = vcmp.lt.s32.totalorder %v538, 3
        %vm560 = vcmp.lt.s32.totalorder %v538, 4
        %v561 = vsel %vm557, %v541, %v544
        %v562 = vsel %vm560, %v550, 2102212464
        %v563 = vsel %vm559, %v547, %v562
        %v564 = vsel %vm558, %v561, %v563
        %v565 = vsel %vm557, %v544, %v547
        %v566 = vsel %vm560, %v553, 920167782
        %v567 = vsel %vm559, %v550, %v566
        %v568 = vsel %vm558, %v565, %v567
        %v569 = vsel %vm557, %v547, %v550
        %v570 = vsel %vm560, %v556, 1326507024
        %v571 = vsel %vm559, %v553, %v570
        %v572 = vsel %vm558, %v569, %v571
        %v573 = vshll.u32 %v533, 8
        %v574 = vand.u32 %v573, 65535
        %v575 = vshrl.u32 %v573, 16
        %v576 = vand.u32 %v572, 65535
        %v577 = vshrl.u32 %v572, 16
        %v578 = vmul.u32 %v574, %v576
        %v579 = vmul.u32 %v574, %v577
        %v580 = vmul.u32 %v575, %v576
        %v581 = vmul.u32 %v575, %v577
        %v582 = vshll.u32 %v579, 16
        %v583 = vshrl.u32 %v579, 16
        %v584 = vshll.u32 %v580, 16
        %v585 = vshrl.u32 %v580, 16
        %vm586 = vc.u32 %v578, %v582
        %v587 = vsel %vm586, 1, 0
        %v588 = vadd.s32 %v578, %v582
        %v589 = vadd.s32 %v581, %v587
        %vm590 = vc.u32 %v588, %v584
        %v591 = vsel %vm590, 1, 0
        %v592 = vadd.s32 %v588, %v584
        %v593 = vadd.s32 %v589, %v591
        %v594 = vadd.s32 %v593, %v583
        %v595 = vadd.s32 %v594, %v585
        %v596 = vand.u32 %v573, 65535
        %v597 = vshrl.u32 %v573, 16
        %v598 = vand.u32 %v568, 65535
        %v599 = vshrl.u32 %v568, 16
        %v600 = vmul.u32 %v596, %v598
        %v601 = vmul.u32 %v596, %v599
        %v602 = vmul.u32 %v597, %v598
        %v603 = vmul.u32 %v597, %v599
        %v604 = vshll.u32 %v601, 16
        %v605 = vshrl.u32 %v601, 16
        %v606 = vshll.u32 %v602, 16
        %v607 = vshrl.u32 %v602, 16
        %vm608 = vc.u32 %v600, %v604
        %v609 = vsel %vm608, 1, 0
        %v610 = vadd.s32 %v600, %v604
        %v611 = vadd.s32 %v603, %v609
        %vm612 = vc.u32 %v610, %v606
        %v613 = vsel %vm612, 1, 0
        %v614 = vadd.s32 %v610, %v606
        %v615 = vadd.s32 %v611, %v613
        %v616 = vadd.s32 %v615, %v605
        %v617 = vadd.s32 %v616, %v607
        %v618 = vmul.u32 %v573, %v564
        %v619 = vadd.s32 %v595, %v614
        %vm620 = vc.u32 %v595, %v614
        %v621 = vadd.s32 %v617, 1
        %v622 = vsel %vm620, %v621, %v617
        %v623 = vadd.s32 %v618, %v622
        %v624 = vadd.s32 %v623, 536870912
        %v625 = vshrl.u32 %v624, 30
        %v626 = vshll.u32 %v625, 30
        %v627 = vsub.s32 %v623, %v626
        %vm628 = vcmp.lt.s32.totalorder %v627, 0
        %v629 = vsub.s32 0, %v627
        %v630 = vsel %vm628, %v629, %v627
        %v631 = vclz %v630
        %v632 = vsub.s32 %v631, 2
        %vm633 = vcmp.gt.s32.totalorder 0, %v632
        %v634 = vsel %vm633, 0, %v632
        %v635 = vsub.s32 32, %v634
        %v636 = vshll.u32 %v627, %v634
        %v637 = vshrl.u32 %v619, %v635
        %v638 = vor.u32 %v636, %v637
        %v639 = vsub.s32 4294967266, %v634
        %v640 = vadd.s32 %v639, 127
        %v641 = vshll.u32 %v640, 23
        %v642 = vor.u32 4788187, %v641
        %v643 = vand.u32 2147483647, %v642
        %v645 = vcvt.s32.f32 %v638
        %v646 = vmul.f32 %v645, %v643
        %v647 = vxor.u32 %v646, 2147483648
        %v648 = vsel %vm527, %v647, %v646
        %v649 = vsub.s32 4, %v625
        %v650 = vsel %vm527, %v649, %v625
        %v651 = vsel %vm526, %v355, %v648
        %v652 = vsel %vm526, 0, %v650
        %v653 = vmul.f32 %v651, %v651
        %v654 = vmul.f32 %v653, -0.001358992
        %v655 = vadd.f32 %v654, 0.041655596
        %v656 = vmul.f32 %v653, %v655
        %v657 = vadd.f32 %v656, -0.4999988
        %v658 = vmul.f32 %v653, %v657
        %v659 = vadd.f32 1.0, %v658
        %v660 = vmul.f32 %v651, %v651
        %v661 = vmul.f32 %v660, -0.00019511016
        %v662 = vadd.f32 %v661, 0.008332121
        %v663 = vmul.f32 %v660, %v662
        %v664 = vadd.f32 %v663, -0.16666654
        %v665 = vmul.f32 %v660, %v664
        %v666 = vadd.f32 %v665, 1.0
        %v667 = vmul.f32 %v666, %v651
        %vm668 = vweird.f32 %v355
        %v669 = vadd.s32 %v652, 3
        %v670 = vand.u32 %v669, 3
        %vm671 = vcmp.lt.s32.totalorder %v670, 2
        %vm672 = vcmp.eq.s32.totalorder %v670, 0
        %v673 = vxor.u32 %v667, 2147483648
        %v674 = vsel %vm672, %v659, %v673
        %vm675 = vcmp.eq.s32.totalorder %v670, 2
        %v676 = vxor.u32 %v659, 2147483648
        %v677 = vsel %vm675, %v676, %v667
        %v678 = vsel %vm671, %v674, %v677
        %v679 = vsel %vm668, nan, %v678
        %v680 = vand.u32 2147483647, %v356
        %vm681 = vcmp.le.f32.partialorder %v680, 0.7853982
        %vm682 = vcmp.lt.s32.totalorder %v356, 0
        %v683 = vand.u32 %v356, 2139095040
        %v684 = vshrl.u32 %v683, 23
        %v685 = vsub.s32 %v684, 127
        %v686 = vand.u32 2147483647, %v356
        %v687 = vand.u32 %v686, 8388607
        %v688 = vor.u32 %v687, 8388608
        %v689 = vsub.s32 0, %v688
        %v690 = vadd.s32 %v685, 1
        %vm691 = vcmp.gt.s32.totalorder %v690, 0
        %v692 = vsel %vm691, %v690, 0
        %v693 = vshrl.u32 %v692, 5
        %v694 = vand.u32 %v692, 31
        %v695 = vsub.s32 32, %v694
        %v696 = vshrl.u32 683565275, %v695
        %v697 = vshll.u32 683565275, %v694
        %v698 = vshrl.u32 2475754826, %v695
        %v699 = vor.u32 %v697, %v698
        %v700 = vshll.u32 2475754826, %v694
        %v701 = vshrl.u32 2131351028, %v695
        %v702 = vor.u32 %v700, %v701
        %v703 = vshll.u32 2131351028, %v694
        %v704 = vshrl.u32 2102212464, %v695
        %v705 = vor.u32 %v703, %v704
        %v706 = vshll.u32 2102212464, %v694
        %v707 = vshrl.u32 920167782, %v695
        %v708 = vor.u32 %v706, %v707
        %v709 = vshll.u32 920167782, %v694
        %v710 = vshrl.u32 1326507024, %v695
        %v711 = vor.u32 %v709, %v710
        %vm712 = vcmp.lt.s32.totalorder %v693, 1
        %vm713 = vcmp.lt.s32.totalorder %v693, 2
        %vm714 = vcmp.lt.s32.totalorder %v693, 3
        %vm715 = vcmp.lt.s32.totalorder %v693, 4
        %v716 = vsel %vm712, %v696, %v699
        %v717 = vsel %vm715, %v705, 2102212464
        %v718 = vsel %vm714, %v702, %v717
        %v719 = vsel %vm713, %v716, %v718
        %v720 = vsel %vm712, %v699, %v702
        %v721 = vsel %vm715, %v708, 920167782
        %v722 = vsel %vm714, %v705, %v721
        %v723 = vsel %vm713, %v720, %v722
        %v724 = vsel %vm712, %v702, %v705
        %v725 = vsel %vm715, %v711, 1326507024
        %v726 = vsel %vm714, %v708, %v725
        %v727 = vsel %vm713, %v724, %v726
        %v728 = vshll.u32 %v688, 8
        %v729 = vand.u32 %v728, 65535
        %v730 = vshrl.u32 %v728, 16
        %v731 = vand.u32 %v727, 65535
        %v732 = vshrl.u32 %v727, 16
        %v733 = vmul.u32 %v729, %v731
        %v734 = vmul.u32 %v729, %v732
        %v735 = vmul.u32 %v730, %v731
        %v736 = vmul.u32 %v730, %v732
        %v737 = vshll.u32 %v734, 16
        %v738 = vshrl.u32 %v734, 16
        %v739 = vshll.u32 %v735, 16
        %v740 = vshrl.u32 %v735, 16
        %vm741 = vc.u32 %v733, %v737
        %v742 = vsel %vm741, 1, 0
        %v743 = vadd.s32 %v733, %v737
        %v744 = vadd.s32 %v736, %v742
        %vm745 = vc.u32 %v743, %v739
        %v746 = vsel %vm745, 1, 0
        %v747 = vadd.s32 %v743, %v739
        %v748 = vadd.s32 %v744, %v746
        %v749 = vadd.s32 %v748, %v738
        %v750 = vadd.s32 %v749, %v740
        %v751 = vand.u32 %v728, 65535
        %v752 = vshrl.u32 %v728, 16
        %v753 = vand.u32 %v723, 65535
        %v754 = vshrl.u32 %v723, 16
        %v755 = vmul.u32 %v751, %v753
        %v756 = vmul.u32 %v751, %v754
        %v757 = vmul.u32 %v752, %v753
        %v758 = vmul.u32 %v752, %v754
        %v759 = vshll.u32 %v756, 16
        %v760 = vshrl.u32 %v756, 16
        %v761 = vshll.u32 %v757, 16
        %v762 = vshrl.u32 %v757, 16
        %vm763 = vc.u32 %v755, %v759
        %v764 = vsel %vm763, 1, 0
        %v765 = vadd.s32 %v755, %v759
        %v766 = vadd.s32 %v758, %v764
        %vm767 = vc.u32 %v765, %v761
        %v768 = vsel %vm767, 1, 0
        %v769 = vadd.s32 %v765, %v761
        %v770 = vadd.s32 %v766, %v768
        %v771 = vadd.s32 %v770, %v760
        %v772 = vadd.s32 %v771, %v762
        %v773 = vmul.u32 %v728, %v719
        %v774 = vadd.s32 %v750, %v769
        %vm775 = vc.u32 %v750, %v769
        %v776 = vadd.s32 %v772, 1
        %v777 = vsel %vm775, %v776, %v772
        %v778 = vadd.s32 %v773, %v777
        %v779 = vadd.s32 %v778, 536870912
        %v780 = vshrl.u32 %v779, 30
        %v781 = vshll.u32 %v780, 30
        %v782 = vsub.s32 %v778, %v781
        %vm783 = vcmp.lt.s32.totalorder %v782, 0
        %v784 = vsub.s32 0, %v782
        %v785 = vsel %vm783, %v784, %v782
        %v786 = vclz %v785
        %v787 = vsub.s32 %v786, 2
        %vm788 = vcmp.gt.s32.totalorder 0, %v787
        %v789 = vsel %vm788, 0, %v787
        %v790 = vsub.s32 32, %v789
        %v791 = vshll.u32 %v782, %v789
        %v792 = vshrl.u32 %v774, %v790
        %v793 = vor.u32 %v791, %v792
        %v794 = vsub.s32 4294967266, %v789
        %v795 = vadd.s32 %v794, 127
        %v796 = vshll.u32 %v795, 23
        %v797 = vor.u32 4788187, %v796
        %v798 = vand.u32 2147483647, %v797
        %v800 = vcvt.s32.f32 %v793
        %v801 = vmul.f32 %v800, %v798
        %v802 = vxor.u32 %v801, 2147483648
        %v803 = vsel %vm682, %v802, %v801
        %v804 = vsub.s32 4, %v780
        %v805 = vsel %vm682, %v804, %v780
        %v806 = vsel %vm681, %v356, %v803
        %v807 = vsel %vm681, 0, %v805
        %v808 = vmul.f32 %v806, %v806
        %v809 = vmul.f32 %v808, -0.001358992
        %v810 = vadd.f32 %v809, 0.041655596
        %v811 = vmul.f32 %v808, %v810
        %v812 = vadd.f32 %v811, -0.4999988
        %v813 = vmul.f32 %v808, %v812
        %v814 = vadd.f32 1.0, %v813
        %v815 = vmul.f32 %v806, %v806
        %v816 = vmul.f32 %v815, -0.00019511016
        %v817 = vadd.f32 %v816, 0.008332121
        %v818 = vmul.f32 %v815, %v817
        %v819 = vadd.f32 %v818, -0.16666654
        %v820 = vmul.f32 %v815, %v819
        %v821 = vadd.f32 %v820, 1.0
        %v822 = vmul.f32 %v821, %v806
        %vm823 = vweird.f32 %v356
        %v824 = vadd.s32 %v807, 3
        %v825 = vand.u32 %v824, 3
        %vm826 = vcmp.lt.s32.totalorder %v825, 2
        %vm827 = vcmp.eq.s32.totalorder %v825, 0
        %v828 = vxor.u32 %v822, 2147483648
        %v829 = vsel %vm827, %v814, %v828
        %vm830 = vcmp.eq.s32.totalorder %v825, 2
        %v831 = vxor.u32 %v814, 2147483648
        %v832 = vsel %vm830, %v831, %v822
        %v833 = vsel %vm826, %v829, %v832
        %v834 = vsel %vm823, nan, %v833
        %v835 = vand.u32 2147483647, %v357
        %vm836 = vcmp.le.f32.partialorder %v835, 0.7853982
        %vm837 = vcmp.lt.s32.totalorder %v357, 0
        %v838 = vand.u32 %v357, 2139095040
        %v839 = vshrl.u32 %v838, 23
        %v840 = vsub.s32 %v839, 127
        %v841 = vand.u32 2147483647, %v357
        %v842 = vand.u32 %v841, 8388607
        %v843 = vor.u32 %v842, 8388608
        %v844 = vsub.s32 0, %v843
        %v845 = vadd.s32 %v840, 1
        %vm846 = vcmp.gt.s32.totalorder %v845, 0
        %v847 = vsel %vm846, %v845, 0
        %v848 = vshrl.u32 %v847, 5
        %v849 = vand.u32 %v847, 31
        %v850 = vsub.s32 32, %v849
        %v851 = vshrl.u32 683565275, %v850
        %v852 = vshll.u32 683565275, %v849
        %v853 = vshrl.u32 2475754826, %v850
        %v854 = vor.u32 %v852, %v853
        %v855 = vshll.u32 2475754826, %v849
        %v856 = vshrl.u32 2131351028, %v850
        %v857 = vor.u32 %v855, %v856
        %v858 = vshll.u32 2131351028, %v849
        %v859 = vshrl.u32 2102212464, %v850
        %v860 = vor.u32 %v858, %v859
        %v861 = vshll.u32 2102212464, %v849
        %v862 = vshrl.u32 920167782, %v850
        %v863 = vor.u32 %v861, %v862
        %v864 = vshll.u32 920167782, %v849
        %v865 = vshrl.u32 1326507024, %v850
        %v866 = vor.u32 %v864, %v865
        %vm867 = vcmp.lt.s32.totalorder %v848, 1
        %vm868 = vcmp.lt.s32.totalorder %v848, 2
        %vm869 = vcmp.lt.s32.totalorder %v848, 3
        %vm870 = vcmp.lt.s32.totalorder %v848, 4
        %v871 = vsel %vm867, %v851, %v854
        %v872 = vsel %vm870, %v860, 2102212464
        %v873 = vsel %vm869, %v857, %v872
        %v874 = vsel %vm868, %v871, %v873
        %v875 = vsel %vm867, %v854, %v857
        %v876 = vsel %vm870, %v863, 920167782
        %v877 = vsel %vm869, %v860, %v876
        %v878 = vsel %vm868, %v875, %v877
        %v879 = vsel %vm867, %v857, %v860
        %v880 = vsel %vm870, %v866, 1326507024
        %v881 = vsel %vm869, %v863, %v880
        %v882 = vsel %vm868, %v879, %v881
        %v883 = vshll.u32 %v843, 8
        %v884 = vand.u32 %v883, 65535
        %v885 = vshrl.u32 %v883, 16
        %v886 = vand.u32 %v882, 65535
        %v887 = vshrl.u32 %v882, 16
        %v888 = vmul.u32 %v884, %v886
        %v889 = vmul.u32 %v884, %v887
        %v890 = vmul.u32 %v885, %v886
        %v891 = vmul.u32 %v885, %v887
        %v892 = vshll.u32 %v889, 16
        %v893 = vshrl.u32 %v889, 16
        %v894 = vshll.u32 %v890, 16
        %v895 = vshrl.u32 %v890, 16
        %vm896 = vc.u32 %v888, %v892
        %v897 = vsel %vm896, 1, 0
        %v898 = vadd.s32 %v888, %v892
        %v899 = vadd.s32 %v891, %v897
        %vm900 = vc.u32 %v898, %v894
        %v901 = vsel %vm900, 1, 0
        %v902 = vadd.s32 %v898, %v894
        %v903 = vadd.s32 %v899, %v901
        %v904 = vadd.s32 %v903, %v893
        %v905 = vadd.s32 %v904, %v895
        %v906 = vand.u32 %v883, 65535
        %v907 = vshrl.u32 %v883, 16
        %v908 = vand.u32 %v878, 65535
        %v909 = vshrl.u32 %v878, 16
        %v910 = vmul.u32 %v906, %v908
        %v911 = vmul.u32 %v906, %v909
        %v912 = vmul.u32 %v907, %v908
        %v913 = vmul.u32 %v907, %v909
        %v914 = vshll.u32 %v911, 16
        %v915 = vshrl.u32 %v911, 16
        %v916 = vshll.u32 %v912, 16
        %v917 = vshrl.u32 %v912, 16
        %vm918 = vc.u32 %v910, %v914
        %v919 = vsel %vm918, 1, 0
        %v920 = vadd.s32 %v910, %v914
        %v921 = vadd.s32 %v913, %v919
        %vm922 = vc.u32 %v920, %v916
        %v923 = vsel %vm922, 1, 0
        %v924 = vadd.s32 %v920, %v916
        %v925 = vadd.s32 %v921, %v923
        %v926 = vadd.s32 %v925, %v915
        %v927 = vadd.s32 %v926, %v917
        %v928 = vmul.u32 %v883, %v874
        %v929 = vadd.s32 %v905, %v924
        %vm930 = vc.u32 %v905, %v924
        %v931 = vadd.s32 %v927, 1
        %v932 = vsel %vm930, %v931, %v927
        %v933 = vadd.s32 %v928, %v932
        %v934 = vadd.s32 %v933, 536870912
        %v935 = vshrl.u32 %v934, 30
        %v936 = vshll.u32 %v935, 30
        %v937 = vsub.s32 %v933, %v936
        %vm938 = vcmp.lt.s32.totalorder %v937, 0
        %v939 = vsub.s32 0, %v937
        %v940 = vsel %vm938, %v939, %v937
        %v941 = vclz %v940
        %v942 = vsub.s32 %v941, 2
        %vm943 = vcmp.gt.s32.totalorder 0, %v942
        %v944 = vsel %vm943, 0, %v942
        %v945 = vsub.s32 32, %v944
        %v946 = vshll.u32 %v937, %v944
        %v947 = vshrl.u32 %v929, %v945
        %v948 = vor.u32 %v946, %v947
        %v949 = vsub.s32 4294967266, %v944
        %v950 = vadd.s32 %v949, 127
        %v951 = vshll.u32 %v950, 23
        %v952 = vor.u32 4788187, %v951
        %v953 = vand.u32 2147483647, %v952
        %v955 = vcvt.s32.f32 %v948
        %v956 = vmul.f32 %v955, %v953
        %v957 = vxor.u32 %v956, 2147483648
        %v958 = vsel %vm837, %v957, %v956
        %v959 = vsub.s32 4, %v935
        %v960 = vsel %vm837, %v959, %v935
        %v961 = vsel %vm836, %v357, %v958
        %v962 = vsel %vm836, 0, %v960
        %v963 = vmul.f32 %v961, %v961
        %v964 = vmul.f32 %v963, -0.001358992
        %v965 = vadd.f32 %v964, 0.041655596
        %v966 = vmul.f32 %v963, %v965
        %v967 = vadd.f32 %v966, -0.4999988
        %v968 = vmul.f32 %v963, %v967
        %v969 = vadd.f32 1.0, %v968
        %v970 = vmul.f32 %v961, %v961
        %v971 = vmul.f32 %v970, -0.00019511016
        %v972 = vadd.f32 %v971, 0.008332121
        %v973 = vmul.f32 %v970, %v972
        %v974 = vadd.f32 %v973, -0.16666654
        %v975 = vmul.f32 %v970, %v974
        %v976 = vadd.f32 %v975, 1.0
        %v977 = vmul.f32 %v976, %v961
        %vm978 = vweird.f32 %v357
        %v979 = vadd.s32 %v962, 3
        %v980 = vand.u32 %v979, 3
        %vm981 = vcmp.lt.s32.totalorder %v980, 2
        %vm982 = vcmp.eq.s32.totalorder %v980, 0
        %v983 = vxor.u32 %v977, 2147483648
        %v984 = vsel %vm982, %v969, %v983
        %vm985 = vcmp.eq.s32.totalorder %v980, 2
        %v986 = vxor.u32 %v969, 2147483648
        %v987 = vsel %vm985, %v986, %v977
        %v988 = vsel %vm981, %v984, %v987
        %v989 = vsel %vm978, nan, %v988
        %v990 = vand.u32 2147483647, %v358
        %vm991 = vcmp.le.f32.partialorder %v990, 0.7853982
        %vm992 = vcmp.lt.s32.totalorder %v358, 0
        %v993 = vand.u32 %v358, 2139095040
        %v994 = vshrl.u32 %v993, 23
        %v995 = vsub.s32 %v994, 127
        %v996 = vand.u32 2147483647, %v358
        %v997 = vand.u32 %v996, 8388607
        %v998 = vor.u32 %v997, 8388608
        %v999 = vsub.s32 0, %v998
        %v1000 = vadd.s32 %v995, 1
        %vm1001 = vcmp.gt.s32.totalorder %v1000, 0
        %v1002 = vsel %vm1001, %v1000, 0
        %v1003 = vshrl.u32 %v1002, 5
        %v1004 = vand.u32 %v1002, 31
        %v1005 = vsub.s32 32, %v1004
        %v1006 = vshrl.u32 683565275, %v1005
        %v1007 = vshll.u32 683565275, %v1004
        %v1008 = vshrl.u32 2475754826, %v1005
        %v1009 = vor.u32 %v1007, %v1008
        %v1010 = vshll.u32 2475754826, %v1004
        %v1011 = vshrl.u32 2131351028, %v1005
        %v1012 = vor.u32 %v1010, %v1011
        %v1013 = vshll.u32 2131351028, %v1004
        %v1014 = vshrl.u32 2102212464, %v1005
        %v1015 = vor.u32 %v1013, %v1014
        %v1016 = vshll.u32 2102212464, %v1004
        %v1017 = vshrl.u32 920167782, %v1005
        %v1018 = vor.u32 %v1016, %v1017
        %v1019 = vshll.u32 920167782, %v1004
        %v1020 = vshrl.u32 1326507024, %v1005
        %v1021 = vor.u32 %v1019, %v1020
        %vm1022 = vcmp.lt.s32.totalorder %v1003, 1
        %vm1023 = vcmp.lt.s32.totalorder %v1003, 2
        %vm1024 = vcmp.lt.s32.totalorder %v1003, 3
        %vm1025 = vcmp.lt.s32.totalorder %v1003, 4
        %v1026 = vsel %vm1022, %v1006, %v1009
        %v1027 = vsel %vm1025, %v1015, 2102212464
        %v1028 = vsel %vm1024, %v1012, %v1027
        %v1029 = vsel %vm1023, %v1026, %v1028
        %v1030 = vsel %vm1022, %v1009, %v1012
        %v1031 = vsel %vm1025, %v1018, 920167782
        %v1032 = vsel %vm1024, %v1015, %v1031
        %v1033 = vsel %vm1023, %v1030, %v1032
        %v1034 = vsel %vm1022, %v1012, %v1015
        %v1035 = vsel %vm1025, %v1021, 1326507024
        %v1036 = vsel %vm1024, %v1018, %v1035
        %v1037 = vsel %vm1023, %v1034, %v1036
        %v1038 = vshll.u32 %v998, 8
        %v1039 = vand.u32 %v1038, 65535
        %v1040 = vshrl.u32 %v1038, 16
        %v1041 = vand.u32 %v1037, 65535
        %v1042 = vshrl.u32 %v1037, 16
        %v1043 = vmul.u32 %v1039, %v1041
        %v1044 = vmul.u32 %v1039, %v1042
        %v1045 = vmul.u32 %v1040, %v1041
        %v1046 = vmul.u32 %v1040, %v1042
        %v1047 = vshll.u32 %v1044, 16
        %v1048 = vshrl.u32 %v1044, 16
        %v1049 = vshll.u32 %v1045, 16
        %v1050 = vshrl.u32 %v1045, 16
        %vm1051 = vc.u32 %v1043, %v1047
        %v1052 = vsel %vm1051, 1, 0
        %v1053 = vadd.s32 %v1043, %v1047
        %v1054 = vadd.s32 %v1046, %v1052
        %vm1055 = vc.u32 %v1053, %v1049
        %v1056 = vsel %vm1055, 1, 0
        %v1057 = vadd.s32 %v1053, %v1049
        %v1058 = vadd.s32 %v1054, %v1056
        %v1059 = vadd.s32 %v1058, %v1048
        %v1060 = vadd.s32 %v1059, %v1050
        %v1061 = vand.u32 %v1038, 65535
        %v1062 = vshrl.u32 %v1038, 16
        %v1063 = vand.u32 %v1033, 65535
        %v1064 = vshrl.u32 %v1033, 16
        %v1065 = vmul.u32 %v1061, %v1063
        %v1066 = vmul.u32 %v1061, %v1064
        %v1067 = vmul.u32 %v1062, %v1063
        %v1068 = vmul.u32 %v1062, %v1064
        %v1069 = vshll.u32 %v1066, 16
        %v1070 = vshrl.u32 %v1066, 16
        %v1071 = vshll.u32 %v1067, 16
        %v1072 = vshrl.u32 %v1067, 16
        %vm1073 = vc.u32 %v1065, %v1069
        %v1074 = vsel %vm1073, 1, 0
        %v1075 = vadd.s32 %v1065, %v1069
        %v1076 = vadd.s32 %v1068, %v1074
        %vm1077 = vc.u32 %v1075, %v1071
        %v1078 = vsel %vm1077, 1, 0
        %v1079 = vadd.s32 %v1075, %v1071
        %v1080 = vadd.s32 %v1076, %v1078
        %v1081 = vadd.s32 %v1080, %v1070
        %v1082 = vadd.s32 %v1081, %v1072
        %v1083 = vmul.u32 %v1038, %v1029
        %v1084 = vadd.s32 %v1060, %v1079
        %vm1085 = vc.u32 %v1060, %v1079
        %v1086 = vadd.s32 %v1082, 1
        %v1087 = vsel %vm1085, %v1086, %v1082
        %v1088 = vadd.s32 %v1083, %v1087
        %v1089 = vadd.s32 %v1088, 536870912
        %v1090 = vshrl.u32 %v1089, 30
        %v1091 = vshll.u32 %v1090, 30
        %v1092 = vsub.s32 %v1088, %v1091
        %vm1093 = vcmp.lt.s32.totalorder %v1092, 0
        %v1094 = vsub.s32 0, %v1092
        %v1095 = vsel %vm1093, %v1094, %v1092
        %v1096 = vclz %v1095
        %v1097 = vsub.s32 %v1096, 2
        %vm1098 = vcmp.gt.s32.totalorder 0, %v1097
        %v1099 = vsel %vm1098, 0, %v1097
        %v1100 = vsub.s32 32, %v1099
        %v1101 = vshll.u32 %v1092, %v1099
        %v1102 = vshrl.u32 %v1084, %v1100
        %v1103 = vor.u32 %v1101, %v1102
        %v1104 = vsub.s32 4294967266, %v1099
        %v1105 = vadd.s32 %v1104, 127
        %v1106 = vshll.u32 %v1105, 23
        %v1107 = vor.u32 4788187, %v1106
        %v1108 = vand.u32 2147483647, %v1107
        %v1110 = vcvt.s32.f32 %v1103
        %v1111 = vmul.f32 %v1110, %v1108
        %v1112 = vxor.u32 %v1111, 2147483648
        %v1113 = vsel %vm992, %v1112, %v1111
        %v1114 = vsub.s32 4, %v1090
        %v1115 = vsel %vm992, %v1114, %v1090
        %v1116 = vsel %vm991, %v358, %v1113
        %v1117 = vsel %vm991, 0, %v1115
        %v1118 = vmul.f32 %v1116, %v1116
        %v1119 = vmul.f32 %v1118, -0.001358992
        %v1120 = vadd.f32 %v1119, 0.041655596
        %v1121 = vmul.f32 %v1118, %v1120
        %v1122 = vadd.f32 %v1121, -0.4999988
        %v1123 = vmul.f32 %v1118, %v1122
        %v1124 = vadd.f32 1.0, %v1123
        %v1125 = vmul.f32 %v1116, %v1116
        %v1126 = vmul.f32 %v1125, -0.00019511016
        %v1127 = vadd.f32 %v1126, 0.008332121
        %v1128 = vmul.f32 %v1125, %v1127
        %v1129 = vadd.f32 %v1128, -0.16666654
        %v1130 = vmul.f32 %v1125, %v1129
        %v1131 = vadd.f32 %v1130, 1.0
        %v1132 = vmul.f32 %v1131, %v1116
        %vm1133 = vweird.f32 %v358
        %v1134 = vadd.s32 %v1117, 3
        %v1135 = vand.u32 %v1134, 3
        %vm1136 = vcmp.lt.s32.totalorder %v1135, 2
        %vm1137 = vcmp.eq.s32.totalorder %v1135, 0
        %v1138 = vxor.u32 %v1132, 2147483648
        %v1139 = vsel %vm1137, %v1124, %v1138
        %vm1140 = vcmp.eq.s32.totalorder %v1135, 2
        %v1141 = vxor.u32 %v1124, 2147483648
        %v1142 = vsel %vm1140, %v1141, %v1132
        %v1143 = vsel %vm1136, %v1139, %v1142
        %v1144 = vsel %vm1133, nan, %v1143
        %v1145 = vand.u32 2147483647, %v359
        %vm1146 = vcmp.le.f32.partialorder %v1145, 0.7853982
        %vm1147 = vcmp.lt.s32.totalorder %v359, 0
        %v1148 = vand.u32 %v359, 2139095040
        %v1149 = vshrl.u32 %v1148, 23
        %v1150 = vsub.s32 %v1149, 127
        %v1151 = vand.u32 2147483647, %v359
        %v1152 = vand.u32 %v1151, 8388607
        %v1153 = vor.u32 %v1152, 8388608
        %v1154 = vsub.s32 0, %v1153
        %v1155 = vadd.s32 %v1150, 1
        %vm1156 = vcmp.gt.s32.totalorder %v1155, 0
        %v1157 = vsel %vm1156, %v1155, 0
        %v1158 = vshrl.u32 %v1157, 5
        %v1159 = vand.u32 %v1157, 31
        %v1160 = vsub.s32 32, %v1159
        %v1161 = vshrl.u32 683565275, %v1160
        %v1162 = vshll.u32 683565275, %v1159
        %v1163 = vshrl.u32 2475754826, %v1160
        %v1164 = vor.u32 %v1162, %v1163
        %v1165 = vshll.u32 2475754826, %v1159
        %v1166 = vshrl.u32 2131351028, %v1160
        %v1167 = vor.u32 %v1165, %v1166
        %v1168 = vshll.u32 2131351028, %v1159
        %v1169 = vshrl.u32 2102212464, %v1160
        %v1170 = vor.u32 %v1168, %v1169
        %v1171 = vshll.u32 2102212464, %v1159
        %v1172 = vshrl.u32 920167782, %v1160
        %v1173 = vor.u32 %v1171, %v1172
        %v1174 = vshll.u32 920167782, %v1159
        %v1175 = vshrl.u32 1326507024, %v1160
        %v1176 = vor.u32 %v1174, %v1175
        %vm1177 = vcmp.lt.s32.totalorder %v1158, 1
        %vm1178 = vcmp.lt.s32.totalorder %v1158, 2
        %vm1179 = vcmp.lt.s32.totalorder %v1158, 3
        %vm1180 = vcmp.lt.s32.totalorder %v1158, 4
        %v1181 = vsel %vm1177, %v1161, %v1164
        %v1182 = vsel %vm1180, %v1170, 2102212464
        %v1183 = vsel %vm1179, %v1167, %v1182
        %v1184 = vsel %vm1178, %v1181, %v1183
        %v1185 = vsel %vm1177, %v1164, %v1167
        %v1186 = vsel %vm1180, %v1173, 920167782
        %v1187 = vsel %vm1179, %v1170, %v1186
        %v1188 = vsel %vm1178, %v1185, %v1187
        %v1189 = vsel %vm1177, %v1167, %v1170
        %v1190 = vsel %vm1180, %v1176, 1326507024
        %v1191 = vsel %vm1179, %v1173, %v1190
        %v1192 = vsel %vm1178, %v1189, %v1191
        %v1193 = vshll.u32 %v1153, 8
        %v1194 = vand.u32 %v1193, 65535
        %v1195 = vshrl.u32 %v1193, 16
        %v1196 = vand.u32 %v1192, 65535
        %v1197 = vshrl.u32 %v1192, 16
        %v1198 = vmul.u32 %v1194, %v1196
        %v1199 = vmul.u32 %v1194, %v1197
        %v1200 = vmul.u32 %v1195, %v1196
        %v1201 = vmul.u32 %v1195, %v1197
        %v1202 = vshll.u32 %v1199, 16
        %v1203 = vshrl.u32 %v1199, 16
        %v1204 = vshll.u32 %v1200, 16
        %v1205 = vshrl.u32 %v1200, 16
        %vm1206 = vc.u32 %v1198, %v1202
        %v1207 = vsel %vm1206, 1, 0
        %v1208 = vadd.s32 %v1198, %v1202
        %v1209 = vadd.s32 %v1201, %v1207
        %vm1210 = vc.u32 %v1208, %v1204
        %v1211 = vsel %vm1210, 1, 0
        %v1212 = vadd.s32 %v1208, %v1204
        %v1213 = vadd.s32 %v1209, %v1211
        %v1214 = vadd.s32 %v1213, %v1203
        %v1215 = vadd.s32 %v1214, %v1205
        %v1216 = vand.u32 %v1193, 65535
        %v1217 = vshrl.u32 %v1193, 16
        %v1218 = vand.u32 %v1188, 65535
        %v1219 = vshrl.u32 %v1188, 16
        %v1220 = vmul.u32 %v1216, %v1218
        %v1221 = vmul.u32 %v1216, %v1219
        %v1222 = vmul.u32 %v1217, %v1218
        %v1223 = vmul.u32 %v1217, %v1219
        %v1224 = vshll.u32 %v1221, 16
        %v1225 = vshrl.u32 %v1221, 16
        %v1226 = vshll.u32 %v1222, 16
        %v1227 = vshrl.u32 %v1222, 16
        %vm1228 = vc.u32 %v1220, %v1224
        %v1229 = vsel %vm1228, 1, 0
        %v1230 = vadd.s32 %v1220, %v1224
        %v1231 = vadd.s32 %v1223, %v1229
        %vm1232 = vc.u32 %v1230, %v1226
        %v1233 = vsel %vm1232, 1, 0
        %v1234 = vadd.s32 %v1230, %v1226
        %v1235 = vadd.s32 %v1231, %v1233
        %v1236 = vadd.s32 %v1235, %v1225
        %v1237 = vadd.s32 %v1236, %v1227
        %v1238 = vmul.u32 %v1193, %v1184
        %v1239 = vadd.s32 %v1215, %v1234
        %vm1240 = vc.u32 %v1215, %v1234
        %v1241 = vadd.s32 %v1237, 1
        %v1242 = vsel %vm1240, %v1241, %v1237
        %v1243 = vadd.s32 %v1238, %v1242
        %v1244 = vadd.s32 %v1243, 536870912
        %v1245 = vshrl.u32 %v1244, 30
        %v1246 = vshll.u32 %v1245, 30
        %v1247 = vsub.s32 %v1243, %v1246
        %vm1248 = vcmp.lt.s32.totalorder %v1247, 0
        %v1249 = vsub.s32 0, %v1247
        %v1250 = vsel %vm1248, %v1249, %v1247
        %v1251 = vclz %v1250
        %v1252 = vsub.s32 %v1251, 2
        %vm1253 = vcmp.gt.s32.totalorder 0, %v1252
        %v1254 = vsel %vm1253, 0, %v1252
        %v1255 = vsub.s32 32, %v1254
        %v1256 = vshll.u32 %v1247, %v1254
        %v1257 = vshrl.u32 %v1239, %v1255
        %v1258 = vor.u32 %v1256, %v1257
        %v1259 = vsub.s32 4294967266, %v1254
        %v1260 = vadd.s32 %v1259, 127
        %v1261 = vshll.u32 %v1260, 23
        %v1262 = vor.u32 4788187, %v1261
        %v1263 = vand.u32 2147483647, %v1262
        %v1265 = vcvt.s32.f32 %v1258
        %v1266 = vmul.f32 %v1265, %v1263
        %v1267 = vxor.u32 %v1266, 2147483648
        %v1268 = vsel %vm1147, %v1267, %v1266
        %v1269 = vsub.s32 4, %v1245
        %v1270 = vsel %vm1147, %v1269, %v1245
        %v1271 = vsel %vm1146, %v359, %v1268
        %v1272 = vsel %vm1146, 0, %v1270
        %v1273 = vmul.f32 %v1271, %v1271
        %v1274 = vmul.f32 %v1273, -0.001358992
        %v1275 = vadd.f32 %v1274, 0.041655596
        %v1276 = vmul.f32 %v1273, %v1275
        %v1277 = vadd.f32 %v1276, -0.4999988
        %v1278 = vmul.f32 %v1273, %v1277
        %v1279 = vadd.f32 1.0, %v1278
        %v1280 = vmul.f32 %v1271, %v1271
        %v1281 = vmul.f32 %v1280, -0.00019511016
        %v1282 = vadd.f32 %v1281, 0.008332121
        %v1283 = vmul.f32 %v1280, %v1282
        %v1284 = vadd.f32 %v1283, -0.16666654
        %v1285 = vmul.f32 %v1280, %v1284
        %v1286 = vadd.f32 %v1285, 1.0
        %v1287 = vmul.f32 %v1286, %v1271
        %vm1288 = vweird.f32 %v359
        %v1289 = vadd.s32 %v1272, 3
        %v1290 = vand.u32 %v1289, 3
        %vm1291 = vcmp.lt.s32.totalorder %v1290, 2
        %vm1292 = vcmp.eq.s32.totalorder %v1290, 0
        %v1293 = vxor.u32 %v1287, 2147483648
        %v1294 = vsel %vm1292, %v1279, %v1293
        %vm1295 = vcmp.eq.s32.totalorder %v1290, 2
        %v1296 = vxor.u32 %v1279, 2147483648
        %v1297 = vsel %vm1295, %v1296, %v1287
        %v1298 = vsel %vm1291, %v1294, %v1297
        %v1299 = vsel %vm1288, nan, %v1298
        %v1300 = vand.u32 2147483647, %v360
        %vm1301 = vcmp.le.f32.partialorder %v1300, 0.7853982
        %vm1302 = vcmp.lt.s32.totalorder %v360, 0
        %v1303 = vand.u32 %v360, 2139095040
        %v1304 = vshrl.u32 %v1303, 23
        %v1305 = vsub.s32 %v1304, 127
        %v1306 = vand.u32 2147483647, %v360
        %v1307 = vand.u32 %v1306, 8388607
        %v1308 = vor.u32 %v1307, 8388608
        %v1309 = vsub.s32 0, %v1308
        %v1310 = vadd.s32 %v1305, 1
        %vm1311 = vcmp.gt.s32.totalorder %v1310, 0
        %v1312 = vsel %vm1311, %v1310, 0
        %v1313 = vshrl.u32 %v1312, 5
        %v1314 = vand.u32 %v1312, 31
        %v1315 = vsub.s32 32, %v1314
        %v1316 = vshrl.u32 683565275, %v1315
        %v1317 = vshll.u32 683565275, %v1314
        %v1318 = vshrl.u32 2475754826, %v1315
        %v1319 = vor.u32 %v1317, %v1318
        %v1320 = vshll.u32 2475754826, %v1314
        %v1321 = vshrl.u32 2131351028, %v1315
        %v1322 = vor.u32 %v1320, %v1321
        %v1323 = vshll.u32 2131351028, %v1314
        %v1324 = vshrl.u32 2102212464, %v1315
        %v1325 = vor.u32 %v1323, %v1324
        %v1326 = vshll.u32 2102212464, %v1314
        %v1327 = vshrl.u32 920167782, %v1315
        %v1328 = vor.u32 %v1326, %v1327
        %v1329 = vshll.u32 920167782, %v1314
        %v1330 = vshrl.u32 1326507024, %v1315
        %v1331 = vor.u32 %v1329, %v1330
        %vm1332 = vcmp.lt.s32.totalorder %v1313, 1
        %vm1333 = vcmp.lt.s32.totalorder %v1313, 2
        %vm1334 = vcmp.lt.s32.totalorder %v1313, 3
        %vm1335 = vcmp.lt.s32.totalorder %v1313, 4
        %v1336 = vsel %vm1332, %v1316, %v1319
        %v1337 = vsel %vm1335, %v1325, 2102212464
        %v1338 = vsel %vm1334, %v1322, %v1337
        %v1339 = vsel %vm1333, %v1336, %v1338
        %v1340 = vsel %vm1332, %v1319, %v1322
        %v1341 = vsel %vm1335, %v1328, 920167782
        %v1342 = vsel %vm1334, %v1325, %v1341
        %v1343 = vsel %vm1333, %v1340, %v1342
        %v1344 = vsel %vm1332, %v1322, %v1325
        %v1345 = vsel %vm1335, %v1331, 1326507024
        %v1346 = vsel %vm1334, %v1328, %v1345
        %v1347 = vsel %vm1333, %v1344, %v1346
        %v1348 = vshll.u32 %v1308, 8
        %v1349 = vand.u32 %v1348, 65535
        %v1350 = vshrl.u32 %v1348, 16
        %v1351 = vand.u32 %v1347, 65535
        %v1352 = vshrl.u32 %v1347, 16
        %v1353 = vmul.u32 %v1349, %v1351
        %v1354 = vmul.u32 %v1349, %v1352
        %v1355 = vmul.u32 %v1350, %v1351
        %v1356 = vmul.u32 %v1350, %v1352
        %v1357 = vshll.u32 %v1354, 16
        %v1358 = vshrl.u32 %v1354, 16
        %v1359 = vshll.u32 %v1355, 16
        %v1360 = vshrl.u32 %v1355, 16
        %vm1361 = vc.u32 %v1353, %v1357
        %v1362 = vsel %vm1361, 1, 0
        %v1363 = vadd.s32 %v1353, %v1357
        %v1364 = vadd.s32 %v1356, %v1362
        %vm1365 = vc.u32 %v1363, %v1359
        %v1366 = vsel %vm1365, 1, 0
        %v1367 = vadd.s32 %v1363, %v1359
        %v1368 = vadd.s32 %v1364, %v1366
        %v1369 = vadd.s32 %v1368, %v1358
        %v1370 = vadd.s32 %v1369, %v1360
        %v1371 = vand.u32 %v1348, 65535
        %v1372 = vshrl.u32 %v1348, 16
        %v1373 = vand.u32 %v1343, 65535
        %v1374 = vshrl.u32 %v1343, 16
        %v1375 = vmul.u32 %v1371, %v1373
        %v1376 = vmul.u32 %v1371, %v1374
        %v1377 = vmul.u32 %v1372, %v1373
        %v1378 = vmul.u32 %v1372, %v1374
        %v1379 = vshll.u32 %v1376, 16
        %v1380 = vshrl.u32 %v1376, 16
        %v1381 = vshll.u32 %v1377, 16
        %v1382 = vshrl.u32 %v1377, 16
        %vm1383 = vc.u32 %v1375, %v1379
        %v1384 = vsel %vm1383, 1, 0
        %v1385 = vadd.s32 %v1375, %v1379
        %v1386 = vadd.s32 %v1378, %v1384
        %vm1387 = vc.u32 %v1385, %v1381
        %v1388 = vsel %vm1387, 1, 0
        %v1389 = vadd.s32 %v1385, %v1381
        %v1390 = vadd.s32 %v1386, %v1388
        %v1391 = vadd.s32 %v1390, %v1380
        %v1392 = vadd.s32 %v1391, %v1382
        %v1393 = vmul.u32 %v1348, %v1339
        %v1394 = vadd.s32 %v1370, %v1389
        %vm1395 = vc.u32 %v1370, %v1389
        %v1396 = vadd.s32 %v1392, 1
        %v1397 = vsel %vm1395, %v1396, %v1392
        %v1398 = vadd.s32 %v1393, %v1397
        %v1399 = vadd.s32 %v1398, 536870912
        %v1400 = vshrl.u32 %v1399, 30
        %v1401 = vshll.u32 %v1400, 30
        %v1402 = vsub.s32 %v1398, %v1401
        %vm1403 = vcmp.lt.s32.totalorder %v1402, 0
        %v1404 = vsub.s32 0, %v1402
        %v1405 = vsel %vm1403, %v1404, %v1402
        %v1406 = vclz %v1405
        %v1407 = vsub.s32 %v1406, 2
        %vm1408 = vcmp.gt.s32.totalorder 0, %v1407
        %v1409 = vsel %vm1408, 0, %v1407
        %v1410 = vsub.s32 32, %v1409
        %v1411 = vshll.u32 %v1402, %v1409
        %v1412 = vshrl.u32 %v1394, %v1410
        %v1413 = vor.u32 %v1411, %v1412
        %v1414 = vsub.s32 4294967266, %v1409
        %v1415 = vadd.s32 %v1414, 127
        %v1416 = vshll.u32 %v1415, 23
        %v1417 = vor.u32 4788187, %v1416
        %v1418 = vand.u32 2147483647, %v1417
        %v1420 = vcvt.s32.f32 %v1413
        %v1421 = vmul.f32 %v1420, %v1418
        %v1422 = vxor.u32 %v1421, 2147483648
        %v1423 = vsel %vm1302, %v1422, %v1421
        %v1424 = vsub.s32 4, %v1400
        %v1425 = vsel %vm1302, %v1424, %v1400
        %v1426 = vsel %vm1301, %v360, %v1423
        %v1427 = vsel %vm1301, 0, %v1425
        %v1428 = vmul.f32 %v1426, %v1426
        %v1429 = vmul.f32 %v1428, -0.001358992
        %v1430 = vadd.f32 %v1429, 0.041655596
        %v1431 = vmul.f32 %v1428, %v1430
        %v1432 = vadd.f32 %v1431, -0.4999988
        %v1433 = vmul.f32 %v1428, %v1432
        %v1434 = vadd.f32 1.0, %v1433
        %v1435 = vmul.f32 %v1426, %v1426
        %v1436 = vmul.f32 %v1435, -0.00019511016
        %v1437 = vadd.f32 %v1436, 0.008332121
        %v1438 = vmul.f32 %v1435, %v1437
        %v1439 = vadd.f32 %v1438, -0.16666654
        %v1440 = vmul.f32 %v1435, %v1439
        %v1441 = vadd.f32 %v1440, 1.0
        %v1442 = vmul.f32 %v1441, %v1426
        %vm1443 = vweird.f32 %v360
        %v1444 = vadd.s32 %v1427, 3
        %v1445 = vand.u32 %v1444, 3
        %vm1446 = vcmp.lt.s32.totalorder %v1445, 2
        %vm1447 = vcmp.eq.s32.totalorder %v1445, 0
        %v1448 = vxor.u32 %v1442, 2147483648
        %v1449 = vsel %vm1447, %v1434, %v1448
        %vm1450 = vcmp.eq.s32.totalorder %v1445, 2
        %v1451 = vxor.u32 %v1434, 2147483648
        %v1452 = vsel %vm1450, %v1451, %v1442
        %v1453 = vsel %vm1446, %v1449, %v1452
        %v1454 = vsel %vm1443, nan, %v1453
        %v1455 = vand.u32 2147483647, %v361
        %vm1456 = vcmp.le.f32.partialorder %v1455, 0.7853982
        %vm1457 = vcmp.lt.s32.totalorder %v361, 0
        %v1458 = vand.u32 %v361, 2139095040
        %v1459 = vshrl.u32 %v1458, 23
        %v1460 = vsub.s32 %v1459, 127
        %v1461 = vand.u32 2147483647, %v361
        %v1462 = vand.u32 %v1461, 8388607
        %v1463 = vor.u32 %v1462, 8388608
        %v1464 = vsub.s32 0, %v1463
        %v1465 = vadd.s32 %v1460, 1
        %vm1466 = vcmp.gt.s32.totalorder %v1465, 0
        %v1467 = vsel %vm1466, %v1465, 0
        %v1468 = vshrl.u32 %v1467, 5
        %v1469 = vand.u32 %v1467, 31
        %v1470 = vsub.s32 32, %v1469
        %v1471 = vshrl.u32 683565275, %v1470
        %v1472 = vshll.u32 683565275, %v1469
        %v1473 = vshrl.u32 2475754826, %v1470
        %v1474 = vor.u32 %v1472, %v1473
        %v1475 = vshll.u32 2475754826, %v1469
        %v1476 = vshrl.u32 2131351028, %v1470
        %v1477 = vor.u32 %v1475, %v1476
        %v1478 = vshll.u32 2131351028, %v1469
        %v1479 = vshrl.u32 2102212464, %v1470
        %v1480 = vor.u32 %v1478, %v1479
        %v1481 = vshll.u32 2102212464, %v1469
        %v1482 = vshrl.u32 920167782, %v1470
        %v1483 = vor.u32 %v1481, %v1482
        %v1484 = vshll.u32 920167782, %v1469
        %v1485 = vshrl.u32 1326507024, %v1470
        %v1486 = vor.u32 %v1484, %v1485
        %vm1487 = vcmp.lt.s32.totalorder %v1468, 1
        %vm1488 = vcmp.lt.s32.totalorder %v1468, 2
        %vm1489 = vcmp.lt.s32.totalorder %v1468, 3
        %vm1490 = vcmp.lt.s32.totalorder %v1468, 4
        %v1491 = vsel %vm1487, %v1471, %v1474
        %v1492 = vsel %vm1490, %v1480, 2102212464
        %v1493 = vsel %vm1489, %v1477, %v1492
        %v1494 = vsel %vm1488, %v1491, %v1493
        %v1495 = vsel %vm1487, %v1474, %v1477
        %v1496 = vsel %vm1490, %v1483, 920167782
        %v1497 = vsel %vm1489, %v1480, %v1496
        %v1498 = vsel %vm1488, %v1495, %v1497
        %v1499 = vsel %vm1487, %v1477, %v1480
        %v1500 = vsel %vm1490, %v1486, 1326507024
        %v1501 = vsel %vm1489, %v1483, %v1500
        %v1502 = vsel %vm1488, %v1499, %v1501
        %v1503 = vshll.u32 %v1463, 8
        %v1504 = vand.u32 %v1503, 65535
        %v1505 = vshrl.u32 %v1503, 16
        %v1506 = vand.u32 %v1502, 65535
        %v1507 = vshrl.u32 %v1502, 16
        %v1508 = vmul.u32 %v1504, %v1506
        %v1509 = vmul.u32 %v1504, %v1507
        %v1510 = vmul.u32 %v1505, %v1506
        %v1511 = vmul.u32 %v1505, %v1507
        %v1512 = vshll.u32 %v1509, 16
        %v1513 = vshrl.u32 %v1509, 16
        %v1514 = vshll.u32 %v1510, 16
        %v1515 = vshrl.u32 %v1510, 16
        %vm1516 = vc.u32 %v1508, %v1512
        %v1517 = vsel %vm1516, 1, 0
        %v1518 = vadd.s32 %v1508, %v1512
        %v1519 = vadd.s32 %v1511, %v1517
        %vm1520 = vc.u32 %v1518, %v1514
        %v1521 = vsel %vm1520, 1, 0
        %v1522 = vadd.s32 %v1518, %v1514
        %v1523 = vadd.s32 %v1519, %v1521
        %v1524 = vadd.s32 %v1523, %v1513
        %v1525 = vadd.s32 %v1524, %v1515
        %v1526 = vand.u32 %v1503, 65535
        %v1527 = vshrl.u32 %v1503, 16
        %v1528 = vand.u32 %v1498, 65535
        %v1529 = vshrl.u32 %v1498, 16
        %v1530 = vmul.u32 %v1526, %v1528
        %v1531 = vmul.u32 %v1526, %v1529
        %v1532 = vmul.u32 %v1527, %v1528
        %v1533 = vmul.u32 %v1527, %v1529
        %v1534 = vshll.u32 %v1531, 16
        %v1535 = vshrl.u32 %v1531, 16
        %v1536 = vshll.u32 %v1532, 16
        %v1537 = vshrl.u32 %v1532, 16
        %vm1538 = vc.u32 %v1530, %v1534
        %v1539 = vsel %vm1538, 1, 0
        %v1540 = vadd.s32 %v1530, %v1534
        %v1541 = vadd.s32 %v1533, %v1539
        %vm1542 = vc.u32 %v1540, %v1536
        %v1543 = vsel %vm1542, 1, 0
        %v1544 = vadd.s32 %v1540, %v1536
        %v1545 = vadd.s32 %v1541, %v1543
        %v1546 = vadd.s32 %v1545, %v1535
        %v1547 = vadd.s32 %v1546, %v1537
        %v1548 = vmul.u32 %v1503, %v1494
        %v1549 = vadd.s32 %v1525, %v1544
        %vm1550 = vc.u32 %v1525, %v1544
        %v1551 = vadd.s32 %v1547, 1
        %v1552 = vsel %vm1550, %v1551, %v1547
        %v1553 = vadd.s32 %v1548, %v1552
        %v1554 = vadd.s32 %v1553, 536870912
        %v1555 = vshrl.u32 %v1554, 30
        %v1556 = vshll.u32 %v1555, 30
        %v1557 = vsub.s32 %v1553, %v1556
        %vm1558 = vcmp.lt.s32.totalorder %v1557, 0
        %v1559 = vsub.s32 0, %v1557
        %v1560 = vsel %vm1558, %v1559, %v1557
        %v1561 = vclz %v1560
        %v1562 = vsub.s32 %v1561, 2
        %vm1563 = vcmp.gt.s32.totalorder 0, %v1562
        %v1564 = vsel %vm1563, 0, %v1562
        %v1565 = vsub.s32 32, %v1564
        %v1566 = vshll.u32 %v1557, %v1564
        %v1567 = vshrl.u32 %v1549, %v1565
        %v1568 = vor.u32 %v1566, %v1567
        %v1569 = vsub.s32 4294967266, %v1564
        %v1570 = vadd.s32 %v1569, 127
        %v1571 = vshll.u32 %v1570, 23
        %v1572 = vor.u32 4788187, %v1571
        %v1573 = vand.u32 2147483647, %v1572
        %v1575 = vcvt.s32.f32 %v1568
        %v1576 = vmul.f32 %v1575, %v1573
        %v1577 = vxor.u32 %v1576, 2147483648
        %v1578 = vsel %vm1457, %v1577, %v1576
        %v1579 = vsub.s32 4, %v1555
        %v1580 = vsel %vm1457, %v1579, %v1555
        %v1581 = vsel %vm1456, %v361, %v1578
        %v1582 = vsel %vm1456, 0, %v1580
        %v1583 = vmul.f32 %v1581, %v1581
        %v1584 = vmul.f32 %v1583, -0.001358992
        %v1585 = vadd.f32 %v1584, 0.041655596
        %v1586 = vmul.f32 %v1583, %v1585
        %v1587 = vadd.f32 %v1586, -0.4999988
        %v1588 = vmul.f32 %v1583, %v1587
        %v1589 = vadd.f32 1.0, %v1588
        %v1590 = vmul.f32 %v1581, %v1581
        %v1591 = vmul.f32 %v1590, -0.00019511016
        %v1592 = vadd.f32 %v1591, 0.008332121
        %v1593 = vmul.f32 %v1590, %v1592
        %v1594 = vadd.f32 %v1593, -0.16666654
        %v1595 = vmul.f32 %v1590, %v1594
        %v1596 = vadd.f32 %v1595, 1.0
        %v1597 = vmul.f32 %v1596, %v1581
        %vm1598 = vweird.f32 %v361
        %v1599 = vadd.s32 %v1582, 3
        %v1600 = vand.u32 %v1599, 3
        %vm1601 = vcmp.lt.s32.totalorder %v1600, 2
        %vm1602 = vcmp.eq.s32.totalorder %v1600, 0
        %v1603 = vxor.u32 %v1597, 2147483648
        %v1604 = vsel %vm1602, %v1589, %v1603
        %vm1605 = vcmp.eq.s32.totalorder %v1600, 2
        %v1606 = vxor.u32 %v1589, 2147483648
        %v1607 = vsel %vm1605, %v1606, %v1597
        %v1608 = vsel %vm1601, %v1604, %v1607
        %v1609 = vsel %vm1598, nan, %v1608
        %v1610 = vand.u32 2147483647, %v362
        %vm1611 = vcmp.le.f32.partialorder %v1610, 0.7853982
        %vm1612 = vcmp.lt.s32.totalorder %v362, 0
        %v1613 = vand.u32 %v362, 2139095040
        %v1614 = vshrl.u32 %v1613, 23
        %v1615 = vsub.s32 %v1614, 127
        %v1616 = vand.u32 2147483647, %v362
        %v1617 = vand.u32 %v1616, 8388607
        %v1618 = vor.u32 %v1617, 8388608
        %v1619 = vsub.s32 0, %v1618
        %v1620 = vadd.s32 %v1615, 1
        %vm1621 = vcmp.gt.s32.totalorder %v1620, 0
        %v1622 = vsel %vm1621, %v1620, 0
        %v1623 = vshrl.u32 %v1622, 5
        %v1624 = vand.u32 %v1622, 31
        %v1625 = vsub.s32 32, %v1624
        %v1626 = vshrl.u32 683565275, %v1625
        %v1627 = vshll.u32 683565275, %v1624
        %v1628 = vshrl.u32 2475754826, %v1625
        %v1629 = vor.u32 %v1627, %v1628
        %v1630 = vshll.u32 2475754826, %v1624
        %v1631 = vshrl.u32 2131351028, %v1625
        %v1632 = vor.u32 %v1630, %v1631
        %v1633 = vshll.u32 2131351028, %v1624
        %v1634 = vshrl.u32 2102212464, %v1625
        %v1635 = vor.u32 %v1633, %v1634
        %v1636 = vshll.u32 2102212464, %v1624
        %v1637 = vshrl.u32 920167782, %v1625
        %v1638 = vor.u32 %v1636, %v1637
        %v1639 = vshll.u32 920167782, %v1624
        %v1640 = vshrl.u32 1326507024, %v1625
        %v1641 = vor.u32 %v1639, %v1640
        %vm1642 = vcmp.lt.s32.totalorder %v1623, 1
        %vm1643 = vcmp.lt.s32.totalorder %v1623, 2
        %vm1644 = vcmp.lt.s32.totalorder %v1623, 3
        %vm1645 = vcmp.lt.s32.totalorder %v1623, 4
        %v1646 = vsel %vm1642, %v1626, %v1629
        %v1647 = vsel %vm1645, %v1635, 2102212464
        %v1648 = vsel %vm1644, %v1632, %v1647
        %v1649 = vsel %vm1643, %v1646, %v1648
        %v1650 = vsel %vm1642, %v1629, %v1632
        %v1651 = vsel %vm1645, %v1638, 920167782
        %v1652 = vsel %vm1644, %v1635, %v1651
        %v1653 = vsel %vm1643, %v1650, %v1652
        %v1654 = vsel %vm1642, %v1632, %v1635
        %v1655 = vsel %vm1645, %v1641, 1326507024
        %v1656 = vsel %vm1644, %v1638, %v1655
        %v1657 = vsel %vm1643, %v1654, %v1656
        %v1658 = vshll.u32 %v1618, 8
        %v1659 = vand.u32 %v1658, 65535
        %v1660 = vshrl.u32 %v1658, 16
        %v1661 = vand.u32 %v1657, 65535
        %v1662 = vshrl.u32 %v1657, 16
        %v1663 = vmul.u32 %v1659, %v1661
        %v1664 = vmul.u32 %v1659, %v1662
        %v1665 = vmul.u32 %v1660, %v1661
        %v1666 = vmul.u32 %v1660, %v1662
        %v1667 = vshll.u32 %v1664, 16
        %v1668 = vshrl.u32 %v1664, 16
        %v1669 = vshll.u32 %v1665, 16
        %v1670 = vshrl.u32 %v1665, 16
        %vm1671 = vc.u32 %v1663, %v1667
        %v1672 = vsel %vm1671, 1, 0
        %v1673 = vadd.s32 %v1663, %v1667
        %v1674 = vadd.s32 %v1666, %v1672
        %vm1675 = vc.u32 %v1673, %v1669
        %v1676 = vsel %vm1675, 1, 0
        %v1677 = vadd.s32 %v1673, %v1669
        %v1678 = vadd.s32 %v1674, %v1676
        %v1679 = vadd.s32 %v1678, %v1668
        %v1680 = vadd.s32 %v1679, %v1670
        %v1681 = vand.u32 %v1658, 65535
        %v1682 = vshrl.u32 %v1658, 16
        %v1683 = vand.u32 %v1653, 65535
        %v1684 = vshrl.u32 %v1653, 16
        %v1685 = vmul.u32 %v1681, %v1683
        %v1686 = vmul.u32 %v1681, %v1684
        %v1687 = vmul.u32 %v1682, %v1683
        %v1688 = vmul.u32 %v1682, %v1684
        %v1689 = vshll.u32 %v1686, 16
        %v1690 = vshrl.u32 %v1686, 16
        %v1691 = vshll.u32 %v1687, 16
        %v1692 = vshrl.u32 %v1687, 16
        %vm1693 = vc.u32 %v1685, %v1689
        %v1694 = vsel %vm1693, 1, 0
        %v1695 = vadd.s32 %v1685, %v1689
        %v1696 = vadd.s32 %v1688, %v1694
        %vm1697 = vc.u32 %v1695, %v1691
        %v1698 = vsel %vm1697, 1, 0
        %v1699 = vadd.s32 %v1695, %v1691
        %v1700 = vadd.s32 %v1696, %v1698
        %v1701 = vadd.s32 %v1700, %v1690
        %v1702 = vadd.s32 %v1701, %v1692
        %v1703 = vmul.u32 %v1658, %v1649
        %v1704 = vadd.s32 %v1680, %v1699
        %vm1705 = vc.u32 %v1680, %v1699
        %v1706 = vadd.s32 %v1702, 1
        %v1707 = vsel %vm1705, %v1706, %v1702
        %v1708 = vadd.s32 %v1703, %v1707
        %v1709 = vadd.s32 %v1708, 536870912
        %v1710 = vshrl.u32 %v1709, 30
        %v1711 = vshll.u32 %v1710, 30
        %v1712 = vsub.s32 %v1708, %v1711
        %vm1713 = vcmp.lt.s32.totalorder %v1712, 0
        %v1714 = vsub.s32 0, %v1712
        %v1715 = vsel %vm1713, %v1714, %v1712
        %v1716 = vclz %v1715
        %v1717 = vsub.s32 %v1716, 2
        %vm1718 = vcmp.gt.s32.totalorder 0, %v1717
        %v1719 = vsel %vm1718, 0, %v1717
        %v1720 = vsub.s32 32, %v1719
        %v1721 = vshll.u32 %v1712, %v1719
        %v1722 = vshrl.u32 %v1704, %v1720
        %v1723 = vor.u32 %v1721, %v1722
        %v1724 = vsub.s32 4294967266, %v1719
        %v1725 = vadd.s32 %v1724, 127
        %v1726 = vshll.u32 %v1725, 23
        %v1727 = vor.u32 4788187, %v1726
        %v1728 = vand.u32 2147483647, %v1727
        %v1730 = vcvt.s32.f32 %v1723
        %v1731 = vmul.f32 %v1730, %v1728
        %v1732 = vxor.u32 %v1731, 2147483648
        %v1733 = vsel %vm1612, %v1732, %v1731
        %v1734 = vsub.s32 4, %v1710
        %v1735 = vsel %vm1612, %v1734, %v1710
        %v1736 = vsel %vm1611, %v362, %v1733
        %v1737 = vsel %vm1611, 0, %v1735
        %v1738 = vmul.f32 %v1736, %v1736
        %v1739 = vmul.f32 %v1738, -0.001358992
        %v1740 = vadd.f32 %v1739, 0.041655596
        %v1741 = vmul.f32 %v1738, %v1740
        %v1742 = vadd.f32 %v1741, -0.4999988
        %v1743 = vmul.f32 %v1738, %v1742
        %v1744 = vadd.f32 1.0, %v1743
        %v1745 = vmul.f32 %v1736, %v1736
        %v1746 = vmul.f32 %v1745, -0.00019511016
        %v1747 = vadd.f32 %v1746, 0.008332121
        %v1748 = vmul.f32 %v1745, %v1747
        %v1749 = vadd.f32 %v1748, -0.16666654
        %v1750 = vmul.f32 %v1745, %v1749
        %v1751 = vadd.f32 %v1750, 1.0
        %v1752 = vmul.f32 %v1751, %v1736
        %vm1753 = vweird.f32 %v362
        %v1754 = vadd.s32 %v1737, 3
        %v1755 = vand.u32 %v1754, 3
        %vm1756 = vcmp.lt.s32.totalorder %v1755, 2
        %vm1757 = vcmp.eq.s32.totalorder %v1755, 0
        %v1758 = vxor.u32 %v1752, 2147483648
        %v1759 = vsel %vm1757, %v1744, %v1758
        %vm1760 = vcmp.eq.s32.totalorder %v1755, 2
        %v1761 = vxor.u32 %v1744, 2147483648
        %v1762 = vsel %vm1760, %v1761, %v1752
        %v1763 = vsel %vm1756, %v1759, %v1762
        %v1764 = vsel %vm1753, nan, %v1763
        %v1765 = vand.u32 2147483647, %v363
        %vm1766 = vcmp.le.f32.partialorder %v1765, 0.7853982
        %vm1767 = vcmp.lt.s32.totalorder %v363, 0
        %v1768 = vand.u32 %v363, 2139095040
        %v1769 = vshrl.u32 %v1768, 23
        %v1770 = vsub.s32 %v1769, 127
        %v1771 = vand.u32 2147483647, %v363
        %v1772 = vand.u32 %v1771, 8388607
        %v1773 = vor.u32 %v1772, 8388608
        %v1774 = vsub.s32 0, %v1773
        %v1775 = vadd.s32 %v1770, 1
        %vm1776 = vcmp.gt.s32.totalorder %v1775, 0
        %v1777 = vsel %vm1776, %v1775, 0
        %v1778 = vshrl.u32 %v1777, 5
        %v1779 = vand.u32 %v1777, 31
        %v1780 = vsub.s32 32, %v1779
        %v1781 = vshrl.u32 683565275, %v1780
        %v1782 = vshll.u32 683565275, %v1779
        %v1783 = vshrl.u32 2475754826, %v1780
        %v1784 = vor.u32 %v1782, %v1783
        %v1785 = vshll.u32 2475754826, %v1779
        %v1786 = vshrl.u32 2131351028, %v1780
        %v1787 = vor.u32 %v1785, %v1786
        %v1788 = vshll.u32 2131351028, %v1779
        %v1789 = vshrl.u32 2102212464, %v1780
        %v1790 = vor.u32 %v1788, %v1789
        %v1791 = vshll.u32 2102212464, %v1779
        %v1792 = vshrl.u32 920167782, %v1780
        %v1793 = vor.u32 %v1791, %v1792
        %v1794 = vshll.u32 920167782, %v1779
        %v1795 = vshrl.u32 1326507024, %v1780
        %v1796 = vor.u32 %v1794, %v1795
        %vm1797 = vcmp.lt.s32.totalorder %v1778, 1
        %vm1798 = vcmp.lt.s32.totalorder %v1778, 2
        %vm1799 = vcmp.lt.s32.totalorder %v1778, 3
        %vm1800 = vcmp.lt.s32.totalorder %v1778, 4
        %v1801 = vsel %vm1797, %v1781, %v1784
        %v1802 = vsel %vm1800, %v1790, 2102212464
        %v1803 = vsel %vm1799, %v1787, %v1802
        %v1804 = vsel %vm1798, %v1801, %v1803
        %v1805 = vsel %vm1797, %v1784, %v1787
        %v1806 = vsel %vm1800, %v1793, 920167782
        %v1807 = vsel %vm1799, %v1790, %v1806
        %v1808 = vsel %vm1798, %v1805, %v1807
        %v1809 = vsel %vm1797, %v1787, %v1790
        %v1810 = vsel %vm1800, %v1796, 1326507024
        %v1811 = vsel %vm1799, %v1793, %v1810
        %v1812 = vsel %vm1798, %v1809, %v1811
        %v1813 = vshll.u32 %v1773, 8
        %v1814 = vand.u32 %v1813, 65535
        %v1815 = vshrl.u32 %v1813, 16
        %v1816 = vand.u32 %v1812, 65535
        %v1817 = vshrl.u32 %v1812, 16
        %v1818 = vmul.u32 %v1814, %v1816
        %v1819 = vmul.u32 %v1814, %v1817
        %v1820 = vmul.u32 %v1815, %v1816
        %v1821 = vmul.u32 %v1815, %v1817
        %v1822 = vshll.u32 %v1819, 16
        %v1823 = vshrl.u32 %v1819, 16
        %v1824 = vshll.u32 %v1820, 16
        %v1825 = vshrl.u32 %v1820, 16
        %vm1826 = vc.u32 %v1818, %v1822
        %v1827 = vsel %vm1826, 1, 0
        %v1828 = vadd.s32 %v1818, %v1822
        %v1829 = vadd.s32 %v1821, %v1827
        %vm1830 = vc.u32 %v1828, %v1824
        %v1831 = vsel %vm1830, 1, 0
        %v1832 = vadd.s32 %v1828, %v1824
        %v1833 = vadd.s32 %v1829, %v1831
        %v1834 = vadd.s32 %v1833, %v1823
        %v1835 = vadd.s32 %v1834, %v1825
        %v1836 = vand.u32 %v1813, 65535
        %v1837 = vshrl.u32 %v1813, 16
        %v1838 = vand.u32 %v1808, 65535
        %v1839 = vshrl.u32 %v1808, 16
        %v1840 = vmul.u32 %v1836, %v1838
        %v1841 = vmul.u32 %v1836, %v1839
        %v1842 = vmul.u32 %v1837, %v1838
        %v1843 = vmul.u32 %v1837, %v1839
        %v1844 = vshll.u32 %v1841, 16
        %v1845 = vshrl.u32 %v1841, 16
        %v1846 = vshll.u32 %v1842, 16
        %v1847 = vshrl.u32 %v1842, 16
        %vm1848 = vc.u32 %v1840, %v1844
        %v1849 = vsel %vm1848, 1, 0
        %v1850 = vadd.s32 %v1840, %v1844
        %v1851 = vadd.s32 %v1843, %v1849
        %vm1852 = vc.u32 %v1850, %v1846
        %v1853 = vsel %vm1852, 1, 0
        %v1854 = vadd.s32 %v1850, %v1846
        %v1855 = vadd.s32 %v1851, %v1853
        %v1856 = vadd.s32 %v1855, %v1845
        %v1857 = vadd.s32 %v1856, %v1847
        %v1858 = vmul.u32 %v1813, %v1804
        %v1859 = vadd.s32 %v1835, %v1854
        %vm1860 = vc.u32 %v1835, %v1854
        %v1861 = vadd.s32 %v1857, 1
        %v1862 = vsel %vm1860, %v1861, %v1857
        %v1863 = vadd.s32 %v1858, %v1862
        %v1864 = vadd.s32 %v1863, 536870912
        %v1865 = vshrl.u32 %v1864, 30
        %v1866 = vshll.u32 %v1865, 30
        %v1867 = vsub.s32 %v1863, %v1866
        %vm1868 = vcmp.lt.s32.totalorder %v1867, 0
        %v1869 = vsub.s32 0, %v1867
        %v1870 = vsel %vm1868, %v1869, %v1867
        %v1871 = vclz %v1870
        %v1872 = vsub.s32 %v1871, 2
        %vm1873 = vcmp.gt.s32.totalorder 0, %v1872
        %v1874 = vsel %vm1873, 0, %v1872
        %v1875 = vsub.s32 32, %v1874
        %v1876 = vshll.u32 %v1867, %v1874
        %v1877 = vshrl.u32 %v1859, %v1875
        %v1878 = vor.u32 %v1876, %v1877
        %v1879 = vsub.s32 4294967266, %v1874
        %v1880 = vadd.s32 %v1879, 127
        %v1881 = vshll.u32 %v1880, 23
        %v1882 = vor.u32 4788187, %v1881
        %v1883 = vand.u32 2147483647, %v1882
        %v1885 = vcvt.s32.f32 %v1878
        %v1886 = vmul.f32 %v1885, %v1883
        %v1887 = vxor.u32 %v1886, 2147483648
        %v1888 = vsel %vm1767, %v1887, %v1886
        %v1889 = vsub.s32 4, %v1865
        %v1890 = vsel %vm1767, %v1889, %v1865
        %v1891 = vsel %vm1766, %v363, %v1888
        %v1892 = vsel %vm1766, 0, %v1890
        %v1893 = vmul.f32 %v1891, %v1891
        %v1894 = vmul.f32 %v1893, -0.001358992
        %v1895 = vadd.f32 %v1894, 0.041655596
        %v1896 = vmul.f32 %v1893, %v1895
        %v1897 = vadd.f32 %v1896, -0.4999988
        %v1898 = vmul.f32 %v1893, %v1897
        %v1899 = vadd.f32 1.0, %v1898
        %v1900 = vmul.f32 %v1891, %v1891
        %v1901 = vmul.f32 %v1900, -0.00019511016
        %v1902 = vadd.f32 %v1901, 0.008332121
        %v1903 = vmul.f32 %v1900, %v1902
        %v1904 = vadd.f32 %v1903, -0.16666654
        %v1905 = vmul.f32 %v1900, %v1904
        %v1906 = vadd.f32 %v1905, 1.0
        %v1907 = vmul.f32 %v1906, %v1891
        %vm1908 = vweird.f32 %v363
        %v1909 = vadd.s32 %v1892, 3
        %v1910 = vand.u32 %v1909, 3
        %vm1911 = vcmp.lt.s32.totalorder %v1910, 2
        %vm1912 = vcmp.eq.s32.totalorder %v1910, 0
        %v1913 = vxor.u32 %v1907, 2147483648
        %v1914 = vsel %vm1912, %v1899, %v1913
        %vm1915 = vcmp.eq.s32.totalorder %v1910, 2
        %v1916 = vxor.u32 %v1899, 2147483648
        %v1917 = vsel %vm1915, %v1916, %v1907
        %v1918 = vsel %vm1911, %v1914, %v1917
        %v1919 = vsel %vm1908, nan, %v1918
        %v1920 = vand.u32 2147483647, %v364
        %vm1921 = vcmp.le.f32.partialorder %v1920, 0.7853982
        %vm1922 = vcmp.lt.s32.totalorder %v364, 0
        %v1923 = vand.u32 %v364, 2139095040
        %v1924 = vshrl.u32 %v1923, 23
        %v1925 = vsub.s32 %v1924, 127
        %v1926 = vand.u32 2147483647, %v364
        %v1927 = vand.u32 %v1926, 8388607
        %v1928 = vor.u32 %v1927, 8388608
        %v1929 = vsub.s32 0, %v1928
        %v1930 = vadd.s32 %v1925, 1
        %vm1931 = vcmp.gt.s32.totalorder %v1930, 0
        %v1932 = vsel %vm1931, %v1930, 0
        %v1933 = vshrl.u32 %v1932, 5
        %v1934 = vand.u32 %v1932, 31
        %v1935 = vsub.s32 32, %v1934
        %v1936 = vshrl.u32 683565275, %v1935
        %v1937 = vshll.u32 683565275, %v1934
        %v1938 = vshrl.u32 2475754826, %v1935
        %v1939 = vor.u32 %v1937, %v1938
        %v1940 = vshll.u32 2475754826, %v1934
        %v1941 = vshrl.u32 2131351028, %v1935
        %v1942 = vor.u32 %v1940, %v1941
        %v1943 = vshll.u32 2131351028, %v1934
        %v1944 = vshrl.u32 2102212464, %v1935
        %v1945 = vor.u32 %v1943, %v1944
        %v1946 = vshll.u32 2102212464, %v1934
        %v1947 = vshrl.u32 920167782, %v1935
        %v1948 = vor.u32 %v1946, %v1947
        %v1949 = vshll.u32 920167782, %v1934
        %v1950 = vshrl.u32 1326507024, %v1935
        %v1951 = vor.u32 %v1949, %v1950
        %vm1952 = vcmp.lt.s32.totalorder %v1933, 1
        %vm1953 = vcmp.lt.s32.totalorder %v1933, 2
        %vm1954 = vcmp.lt.s32.totalorder %v1933, 3
        %vm1955 = vcmp.lt.s32.totalorder %v1933, 4
        %v1956 = vsel %vm1952, %v1936, %v1939
        %v1957 = vsel %vm1955, %v1945, 2102212464
        %v1958 = vsel %vm1954, %v1942, %v1957
        %v1959 = vsel %vm1953, %v1956, %v1958
        %v1960 = vsel %vm1952, %v1939, %v1942
        %v1961 = vsel %vm1955, %v1948, 920167782
        %v1962 = vsel %vm1954, %v1945, %v1961
        %v1963 = vsel %vm1953, %v1960, %v1962
        %v1964 = vsel %vm1952, %v1942, %v1945
        %v1965 = vsel %vm1955, %v1951, 1326507024
        %v1966 = vsel %vm1954, %v1948, %v1965
        %v1967 = vsel %vm1953, %v1964, %v1966
        %v1968 = vshll.u32 %v1928, 8
        %v1969 = vand.u32 %v1968, 65535
        %v1970 = vshrl.u32 %v1968, 16
        %v1971 = vand.u32 %v1967, 65535
        %v1972 = vshrl.u32 %v1967, 16
        %v1973 = vmul.u32 %v1969, %v1971
        %v1974 = vmul.u32 %v1969, %v1972
        %v1975 = vmul.u32 %v1970, %v1971
        %v1976 = vmul.u32 %v1970, %v1972
        %v1977 = vshll.u32 %v1974, 16
        %v1978 = vshrl.u32 %v1974, 16
        %v1979 = vshll.u32 %v1975, 16
        %v1980 = vshrl.u32 %v1975, 16
        %vm1981 = vc.u32 %v1973, %v1977
        %v1982 = vsel %vm1981, 1, 0
        %v1983 = vadd.s32 %v1973, %v1977
        %v1984 = vadd.s32 %v1976, %v1982
        %vm1985 = vc.u32 %v1983, %v1979
        %v1986 = vsel %vm1985, 1, 0
        %v1987 = vadd.s32 %v1983, %v1979
        %v1988 = vadd.s32 %v1984, %v1986
        %v1989 = vadd.s32 %v1988, %v1978
        %v1990 = vadd.s32 %v1989, %v1980
        %v1991 = vand.u32 %v1968, 65535
        %v1992 = vshrl.u32 %v1968, 16
        %v1993 = vand.u32 %v1963, 65535
        %v1994 = vshrl.u32 %v1963, 16
        %v1995 = vmul.u32 %v1991, %v1993
        %v1996 = vmul.u32 %v1991, %v1994
        %v1997 = vmul.u32 %v1992, %v1993
        %v1998 = vmul.u32 %v1992, %v1994
        %v1999 = vshll.u32 %v1996, 16
        %v2000 = vshrl.u32 %v1996, 16
        %v2001 = vshll.u32 %v1997, 16
        %v2002 = vshrl.u32 %v1997, 16
        %vm2003 = vc.u32 %v1995, %v1999
        %v2004 = vsel %vm2003, 1, 0
        %v2005 = vadd.s32 %v1995, %v1999
        %v2006 = vadd.s32 %v1998, %v2004
        %vm2007 = vc.u32 %v2005, %v2001
        %v2008 = vsel %vm2007, 1, 0
        %v2009 = vadd.s32 %v2005, %v2001
        %v2010 = vadd.s32 %v2006, %v2008
        %v2011 = vadd.s32 %v2010, %v2000
        %v2012 = vadd.s32 %v2011, %v2002
        %v2013 = vmul.u32 %v1968, %v1959
        %v2014 = vadd.s32 %v1990, %v2009
        %vm2015 = vc.u32 %v1990, %v2009
        %v2016 = vadd.s32 %v2012, 1
        %v2017 = vsel %vm2015, %v2016, %v2012
        %v2018 = vadd.s32 %v2013, %v2017
        %v2019 = vadd.s32 %v2018, 536870912
        %v2020 = vshrl.u32 %v2019, 30
        %v2021 = vshll.u32 %v2020, 30
        %v2022 = vsub.s32 %v2018, %v2021
        %vm2023 = vcmp.lt.s32.totalorder %v2022, 0
        %v2024 = vsub.s32 0, %v2022
        %v2025 = vsel %vm2023, %v2024, %v2022
        %v2026 = vclz %v2025
        %v2027 = vsub.s32 %v2026, 2
        %vm2028 = vcmp.gt.s32.totalorder 0, %v2027
        %v2029 = vsel %vm2028, 0, %v2027
        %v2030 = vsub.s32 32, %v2029
        %v2031 = vshll.u32 %v2022, %v2029
        %v2032 = vshrl.u32 %v2014, %v2030
        %v2033 = vor.u32 %v2031, %v2032
        %v2034 = vsub.s32 4294967266, %v2029
        %v2035 = vadd.s32 %v2034, 127
        %v2036 = vshll.u32 %v2035, 23
        %v2037 = vor.u32 4788187, %v2036
        %v2038 = vand.u32 2147483647, %v2037
        %v2040 = vcvt.s32.f32 %v2033
        %v2041 = vmul.f32 %v2040, %v2038
        %v2042 = vxor.u32 %v2041, 2147483648
        %v2043 = vsel %vm1922, %v2042, %v2041
        %v2044 = vsub.s32 4, %v2020
        %v2045 = vsel %vm1922, %v2044, %v2020
        %v2046 = vsel %vm1921, %v364, %v2043
        %v2047 = vsel %vm1921, 0, %v2045
        %v2048 = vmul.f32 %v2046, %v2046
        %v2049 = vmul.f32 %v2048, -0.001358992
        %v2050 = vadd.f32 %v2049, 0.041655596
        %v2051 = vmul.f32 %v2048, %v2050
        %v2052 = vadd.f32 %v2051, -0.4999988
        %v2053 = vmul.f32 %v2048, %v2052
        %v2054 = vadd.f32 1.0, %v2053
        %v2055 = vmul.f32 %v2046, %v2046
        %v2056 = vmul.f32 %v2055, -0.00019511016
        %v2057 = vadd.f32 %v2056, 0.008332121
        %v2058 = vmul.f32 %v2055, %v2057
        %v2059 = vadd.f32 %v2058, -0.16666654
        %v2060 = vmul.f32 %v2055, %v2059
        %v2061 = vadd.f32 %v2060, 1.0
        %v2062 = vmul.f32 %v2061, %v2046
        %vm2063 = vweird.f32 %v364
        %v2064 = vadd.s32 %v2047, 3
        %v2065 = vand.u32 %v2064, 3
        %vm2066 = vcmp.lt.s32.totalorder %v2065, 2
        %vm2067 = vcmp.eq.s32.totalorder %v2065, 0
        %v2068 = vxor.u32 %v2062, 2147483648
        %v2069 = vsel %vm2067, %v2054, %v2068
        %vm2070 = vcmp.eq.s32.totalorder %v2065, 2
        %v2071 = vxor.u32 %v2054, 2147483648
        %v2072 = vsel %vm2070, %v2071, %v2062
        %v2073 = vsel %vm2066, %v2069, %v2072
        %v2074 = vsel %vm2063, nan, %v2073
        %v2075 = vand.u32 2147483647, %v365
        %vm2076 = vcmp.le.f32.partialorder %v2075, 0.7853982
        %vm2077 = vcmp.lt.s32.totalorder %v365, 0
        %v2078 = vand.u32 %v365, 2139095040
        %v2079 = vshrl.u32 %v2078, 23
        %v2080 = vsub.s32 %v2079, 127
        %v2081 = vand.u32 2147483647, %v365
        %v2082 = vand.u32 %v2081, 8388607
        %v2083 = vor.u32 %v2082, 8388608
        %v2084 = vsub.s32 0, %v2083
        %v2085 = vadd.s32 %v2080, 1
        %vm2086 = vcmp.gt.s32.totalorder %v2085, 0
        %v2087 = vsel %vm2086, %v2085, 0
        %v2088 = vshrl.u32 %v2087, 5
        %v2089 = vand.u32 %v2087, 31
        %v2090 = vsub.s32 32, %v2089
        %v2091 = vshrl.u32 683565275, %v2090
        %v2092 = vshll.u32 683565275, %v2089
        %v2093 = vshrl.u32 2475754826, %v2090
        %v2094 = vor.u32 %v2092, %v2093
        %v2095 = vshll.u32 2475754826, %v2089
        %v2096 = vshrl.u32 2131351028, %v2090
        %v2097 = vor.u32 %v2095, %v2096
        %v2098 = vshll.u32 2131351028, %v2089
        %v2099 = vshrl.u32 2102212464, %v2090
        %v2100 = vor.u32 %v2098, %v2099
        %v2101 = vshll.u32 2102212464, %v2089
        %v2102 = vshrl.u32 920167782, %v2090
        %v2103 = vor.u32 %v2101, %v2102
        %v2104 = vshll.u32 920167782, %v2089
        %v2105 = vshrl.u32 1326507024, %v2090
        %v2106 = vor.u32 %v2104, %v2105
        %vm2107 = vcmp.lt.s32.totalorder %v2088, 1
        %vm2108 = vcmp.lt.s32.totalorder %v2088, 2
        %vm2109 = vcmp.lt.s32.totalorder %v2088, 3
        %vm2110 = vcmp.lt.s32.totalorder %v2088, 4
        %v2111 = vsel %vm2107, %v2091, %v2094
        %v2112 = vsel %vm2110, %v2100, 2102212464
        %v2113 = vsel %vm2109, %v2097, %v2112
        %v2114 = vsel %vm2108, %v2111, %v2113
        %v2115 = vsel %vm2107, %v2094, %v2097
        %v2116 = vsel %vm2110, %v2103, 920167782
        %v2117 = vsel %vm2109, %v2100, %v2116
        %v2118 = vsel %vm2108, %v2115, %v2117
        %v2119 = vsel %vm2107, %v2097, %v2100
        %v2120 = vsel %vm2110, %v2106, 1326507024
        %v2121 = vsel %vm2109, %v2103, %v2120
        %v2122 = vsel %vm2108, %v2119, %v2121
        %v2123 = vshll.u32 %v2083, 8
        %v2124 = vand.u32 %v2123, 65535
        %v2125 = vshrl.u32 %v2123, 16
        %v2126 = vand.u32 %v2122, 65535
        %v2127 = vshrl.u32 %v2122, 16
        %v2128 = vmul.u32 %v2124, %v2126
        %v2129 = vmul.u32 %v2124, %v2127
        %v2130 = vmul.u32 %v2125, %v2126
        %v2131 = vmul.u32 %v2125, %v2127
        %v2132 = vshll.u32 %v2129, 16
        %v2133 = vshrl.u32 %v2129, 16
        %v2134 = vshll.u32 %v2130, 16
        %v2135 = vshrl.u32 %v2130, 16
        %vm2136 = vc.u32 %v2128, %v2132
        %v2137 = vsel %vm2136, 1, 0
        %v2138 = vadd.s32 %v2128, %v2132
        %v2139 = vadd.s32 %v2131, %v2137
        %vm2140 = vc.u32 %v2138, %v2134
        %v2141 = vsel %vm2140, 1, 0
        %v2142 = vadd.s32 %v2138, %v2134
        %v2143 = vadd.s32 %v2139, %v2141
        %v2144 = vadd.s32 %v2143, %v2133
        %v2145 = vadd.s32 %v2144, %v2135
        %v2146 = vand.u32 %v2123, 65535
        %v2147 = vshrl.u32 %v2123, 16
        %v2148 = vand.u32 %v2118, 65535
        %v2149 = vshrl.u32 %v2118, 16
        %v2150 = vmul.u32 %v2146, %v2148
        %v2151 = vmul.u32 %v2146, %v2149
        %v2152 = vmul.u32 %v2147, %v2148
        %v2153 = vmul.u32 %v2147, %v2149
        %v2154 = vshll.u32 %v2151, 16
        %v2155 = vshrl.u32 %v2151, 16
        %v2156 = vshll.u32 %v2152, 16
        %v2157 = vshrl.u32 %v2152, 16
        %vm2158 = vc.u32 %v2150, %v2154
        %v2159 = vsel %vm2158, 1, 0
        %v2160 = vadd.s32 %v2150, %v2154
        %v2161 = vadd.s32 %v2153, %v2159
        %vm2162 = vc.u32 %v2160, %v2156
        %v2163 = vsel %vm2162, 1, 0
        %v2164 = vadd.s32 %v2160, %v2156
        %v2165 = vadd.s32 %v2161, %v2163
        %v2166 = vadd.s32 %v2165, %v2155
        %v2167 = vadd.s32 %v2166, %v2157
        %v2168 = vmul.u32 %v2123, %v2114
        %v2169 = vadd.s32 %v2145, %v2164
        %vm2170 = vc.u32 %v2145, %v2164
        %v2171 = vadd.s32 %v2167, 1
        %v2172 = vsel %vm2170, %v2171, %v2167
        %v2173 = vadd.s32 %v2168, %v2172
        %v2174 = vadd.s32 %v2173, 536870912
        %v2175 = vshrl.u32 %v2174, 30
        %v2176 = vshll.u32 %v2175, 30
        %v2177 = vsub.s32 %v2173, %v2176
        %vm2178 = vcmp.lt.s32.totalorder %v2177, 0
        %v2179 = vsub.s32 0, %v2177
        %v2180 = vsel %vm2178, %v2179, %v2177
        %v2181 = vclz %v2180
        %v2182 = vsub.s32 %v2181, 2
        %vm2183 = vcmp.gt.s32.totalorder 0, %v2182
        %v2184 = vsel %vm2183, 0, %v2182
        %v2185 = vsub.s32 32, %v2184
        %v2186 = vshll.u32 %v2177, %v2184
        %v2187 = vshrl.u32 %v2169, %v2185
        %v2188 = vor.u32 %v2186, %v2187
        %v2189 = vsub.s32 4294967266, %v2184
        %v2190 = vadd.s32 %v2189, 127
        %v2191 = vshll.u32 %v2190, 23
        %v2192 = vor.u32 4788187, %v2191
        %v2193 = vand.u32 2147483647, %v2192
        %v2195 = vcvt.s32.f32 %v2188
        %v2196 = vmul.f32 %v2195, %v2193
        %v2197 = vxor.u32 %v2196, 2147483648
        %v2198 = vsel %vm2077, %v2197, %v2196
        %v2199 = vsub.s32 4, %v2175
        %v2200 = vsel %vm2077, %v2199, %v2175
        %v2201 = vsel %vm2076, %v365, %v2198
        %v2202 = vsel %vm2076, 0, %v2200
        %v2203 = vmul.f32 %v2201, %v2201
        %v2204 = vmul.f32 %v2203, -0.001358992
        %v2205 = vadd.f32 %v2204, 0.041655596
        %v2206 = vmul.f32 %v2203, %v2205
        %v2207 = vadd.f32 %v2206, -0.4999988
        %v2208 = vmul.f32 %v2203, %v2207
        %v2209 = vadd.f32 1.0, %v2208
        %v2210 = vmul.f32 %v2201, %v2201
        %v2211 = vmul.f32 %v2210, -0.00019511016
        %v2212 = vadd.f32 %v2211, 0.008332121
        %v2213 = vmul.f32 %v2210, %v2212
        %v2214 = vadd.f32 %v2213, -0.16666654
        %v2215 = vmul.f32 %v2210, %v2214
        %v2216 = vadd.f32 %v2215, 1.0
        %v2217 = vmul.f32 %v2216, %v2201
        %vm2218 = vweird.f32 %v365
        %v2219 = vadd.s32 %v2202, 3
        %v2220 = vand.u32 %v2219, 3
        %vm2221 = vcmp.lt.s32.totalorder %v2220, 2
        %vm2222 = vcmp.eq.s32.totalorder %v2220, 0
        %v2223 = vxor.u32 %v2217, 2147483648
        %v2224 = vsel %vm2222, %v2209, %v2223
        %vm2225 = vcmp.eq.s32.totalorder %v2220, 2
        %v2226 = vxor.u32 %v2209, 2147483648
        %v2227 = vsel %vm2225, %v2226, %v2217
        %v2228 = vsel %vm2221, %v2224, %v2227
        %v2229 = vsel %vm2218, nan, %v2228
        %v2230 = vand.u32 2147483647, %v366
        %vm2231 = vcmp.le.f32.partialorder %v2230, 0.7853982
        %vm2232 = vcmp.lt.s32.totalorder %v366, 0
        %v2233 = vand.u32 %v366, 2139095040
        %v2234 = vshrl.u32 %v2233, 23
        %v2235 = vsub.s32 %v2234, 127
        %v2236 = vand.u32 2147483647, %v366
        %v2237 = vand.u32 %v2236, 8388607
        %v2238 = vor.u32 %v2237, 8388608
        %v2239 = vsub.s32 0, %v2238
        %v2240 = vadd.s32 %v2235, 1
        %vm2241 = vcmp.gt.s32.totalorder %v2240, 0
        %v2242 = vsel %vm2241, %v2240, 0
        %v2243 = vshrl.u32 %v2242, 5
        %v2244 = vand.u32 %v2242, 31
        %v2245 = vsub.s32 32, %v2244
        %v2246 = vshrl.u32 683565275, %v2245
        %v2247 = vshll.u32 683565275, %v2244
        %v2248 = vshrl.u32 2475754826, %v2245
        %v2249 = vor.u32 %v2247, %v2248
        %v2250 = vshll.u32 2475754826, %v2244
        %v2251 = vshrl.u32 2131351028, %v2245
        %v2252 = vor.u32 %v2250, %v2251
        %v2253 = vshll.u32 2131351028, %v2244
        %v2254 = vshrl.u32 2102212464, %v2245
        %v2255 = vor.u32 %v2253, %v2254
        %v2256 = vshll.u32 2102212464, %v2244
        %v2257 = vshrl.u32 920167782, %v2245
        %v2258 = vor.u32 %v2256, %v2257
        %v2259 = vshll.u32 920167782, %v2244
        %v2260 = vshrl.u32 1326507024, %v2245
        %v2261 = vor.u32 %v2259, %v2260
        %vm2262 = vcmp.lt.s32.totalorder %v2243, 1
        %vm2263 = vcmp.lt.s32.totalorder %v2243, 2
        %vm2264 = vcmp.lt.s32.totalorder %v2243, 3
        %vm2265 = vcmp.lt.s32.totalorder %v2243, 4
        %v2266 = vsel %vm2262, %v2246, %v2249
        %v2267 = vsel %vm2265, %v2255, 2102212464
        %v2268 = vsel %vm2264, %v2252, %v2267
        %v2269 = vsel %vm2263, %v2266, %v2268
        %v2270 = vsel %vm2262, %v2249, %v2252
        %v2271 = vsel %vm2265, %v2258, 920167782
        %v2272 = vsel %vm2264, %v2255, %v2271
        %v2273 = vsel %vm2263, %v2270, %v2272
        %v2274 = vsel %vm2262, %v2252, %v2255
        %v2275 = vsel %vm2265, %v2261, 1326507024
        %v2276 = vsel %vm2264, %v2258, %v2275
        %v2277 = vsel %vm2263, %v2274, %v2276
        %v2278 = vshll.u32 %v2238, 8
        %v2279 = vand.u32 %v2278, 65535
        %v2280 = vshrl.u32 %v2278, 16
        %v2281 = vand.u32 %v2277, 65535
        %v2282 = vshrl.u32 %v2277, 16
        %v2283 = vmul.u32 %v2279, %v2281
        %v2284 = vmul.u32 %v2279, %v2282
        %v2285 = vmul.u32 %v2280, %v2281
        %v2286 = vmul.u32 %v2280, %v2282
        %v2287 = vshll.u32 %v2284, 16
        %v2288 = vshrl.u32 %v2284, 16
        %v2289 = vshll.u32 %v2285, 16
        %v2290 = vshrl.u32 %v2285, 16
        %vm2291 = vc.u32 %v2283, %v2287
        %v2292 = vsel %vm2291, 1, 0
        %v2293 = vadd.s32 %v2283, %v2287
        %v2294 = vadd.s32 %v2286, %v2292
        %vm2295 = vc.u32 %v2293, %v2289
        %v2296 = vsel %vm2295, 1, 0
        %v2297 = vadd.s32 %v2293, %v2289
        %v2298 = vadd.s32 %v2294, %v2296
        %v2299 = vadd.s32 %v2298, %v2288
        %v2300 = vadd.s32 %v2299, %v2290
        %v2301 = vand.u32 %v2278, 65535
        %v2302 = vshrl.u32 %v2278, 16
        %v2303 = vand.u32 %v2273, 65535
        %v2304 = vshrl.u32 %v2273, 16
        %v2305 = vmul.u32 %v2301, %v2303
        %v2306 = vmul.u32 %v2301, %v2304
        %v2307 = vmul.u32 %v2302, %v2303
        %v2308 = vmul.u32 %v2302, %v2304
        %v2309 = vshll.u32 %v2306, 16
        %v2310 = vshrl.u32 %v2306, 16
        %v2311 = vshll.u32 %v2307, 16
        %v2312 = vshrl.u32 %v2307, 16
        %vm2313 = vc.u32 %v2305, %v2309
        %v2314 = vsel %vm2313, 1, 0
        %v2315 = vadd.s32 %v2305, %v2309
        %v2316 = vadd.s32 %v2308, %v2314
        %vm2317 = vc.u32 %v2315, %v2311
        %v2318 = vsel %vm2317, 1, 0
        %v2319 = vadd.s32 %v2315, %v2311
        %v2320 = vadd.s32 %v2316, %v2318
        %v2321 = vadd.s32 %v2320, %v2310
        %v2322 = vadd.s32 %v2321, %v2312
        %v2323 = vmul.u32 %v2278, %v2269
        %v2324 = vadd.s32 %v2300, %v2319
        %vm2325 = vc.u32 %v2300, %v2319
        %v2326 = vadd.s32 %v2322, 1
        %v2327 = vsel %vm2325, %v2326, %v2322
        %v2328 = vadd.s32 %v2323, %v2327
        %v2329 = vadd.s32 %v2328, 536870912
        %v2330 = vshrl.u32 %v2329, 30
        %v2331 = vshll.u32 %v2330, 30
        %v2332 = vsub.s32 %v2328, %v2331
        %vm2333 = vcmp.lt.s32.totalorder %v2332, 0
        %v2334 = vsub.s32 0, %v2332
        %v2335 = vsel %vm2333, %v2334, %v2332
        %v2336 = vclz %v2335
        %v2337 = vsub.s32 %v2336, 2
        %vm2338 = vcmp.gt.s32.totalorder 0, %v2337
        %v2339 = vsel %vm2338, 0, %v2337
        %v2340 = vsub.s32 32, %v2339
        %v2341 = vshll.u32 %v2332, %v2339
        %v2342 = vshrl.u32 %v2324, %v2340
        %v2343 = vor.u32 %v2341, %v2342
        %v2344 = vsub.s32 4294967266, %v2339
        %v2345 = vadd.s32 %v2344, 127
        %v2346 = vshll.u32 %v2345, 23
        %v2347 = vor.u32 4788187, %v2346
        %v2348 = vand.u32 2147483647, %v2347
        %v2350 = vcvt.s32.f32 %v2343
        %v2351 = vmul.f32 %v2350, %v2348
        %v2352 = vxor.u32 %v2351, 2147483648
        %v2353 = vsel %vm2232, %v2352, %v2351
        %v2354 = vsub.s32 4, %v2330
        %v2355 = vsel %vm2232, %v2354, %v2330
        %v2356 = vsel %vm2231, %v366, %v2353
        %v2357 = vsel %vm2231, 0, %v2355
        %v2358 = vmul.f32 %v2356, %v2356
        %v2359 = vmul.f32 %v2358, -0.001358992
        %v2360 = vadd.f32 %v2359, 0.041655596
        %v2361 = vmul.f32 %v2358, %v2360
        %v2362 = vadd.f32 %v2361, -0.4999988
        %v2363 = vmul.f32 %v2358, %v2362
        %v2364 = vadd.f32 1.0, %v2363
        %v2365 = vmul.f32 %v2356, %v2356
        %v2366 = vmul.f32 %v2365, -0.00019511016
        %v2367 = vadd.f32 %v2366, 0.008332121
        %v2368 = vmul.f32 %v2365, %v2367
        %v2369 = vadd.f32 %v2368, -0.16666654
        %v2370 = vmul.f32 %v2365, %v2369
        %v2371 = vadd.f32 %v2370, 1.0
        %v2372 = vmul.f32 %v2371, %v2356
        %vm2373 = vweird.f32 %v366
        %v2374 = vadd.s32 %v2357, 3
        %v2375 = vand.u32 %v2374, 3
        %vm2376 = vcmp.lt.s32.totalorder %v2375, 2
        %vm2377 = vcmp.eq.s32.totalorder %v2375, 0
        %v2378 = vxor.u32 %v2372, 2147483648
        %v2379 = vsel %vm2377, %v2364, %v2378
        %vm2380 = vcmp.eq.s32.totalorder %v2375, 2
        %v2381 = vxor.u32 %v2364, 2147483648
        %v2382 = vsel %vm2380, %v2381, %v2372
        %v2383 = vsel %vm2376, %v2379, %v2382
        %v2384 = vsel %vm2373, nan, %v2383
        %v2385 = vand.u32 2147483647, %v367
        %vm2386 = vcmp.le.f32.partialorder %v2385, 0.7853982
        %vm2387 = vcmp.lt.s32.totalorder %v367, 0
        %v2388 = vand.u32 %v367, 2139095040
        %v2389 = vshrl.u32 %v2388, 23
        %v2390 = vsub.s32 %v2389, 127
        %v2391 = vand.u32 2147483647, %v367
        %v2392 = vand.u32 %v2391, 8388607
        %v2393 = vor.u32 %v2392, 8388608
        %v2394 = vsub.s32 0, %v2393
        %v2395 = vadd.s32 %v2390, 1
        %vm2396 = vcmp.gt.s32.totalorder %v2395, 0
        %v2397 = vsel %vm2396, %v2395, 0
        %v2398 = vshrl.u32 %v2397, 5
        %v2399 = vand.u32 %v2397, 31
        %v2400 = vsub.s32 32, %v2399
        %v2401 = vshrl.u32 683565275, %v2400
        %v2402 = vshll.u32 683565275, %v2399
        %v2403 = vshrl.u32 2475754826, %v2400
        %v2404 = vor.u32 %v2402, %v2403
        %v2405 = vshll.u32 2475754826, %v2399
        %v2406 = vshrl.u32 2131351028, %v2400
        %v2407 = vor.u32 %v2405, %v2406
        %v2408 = vshll.u32 2131351028, %v2399
        %v2409 = vshrl.u32 2102212464, %v2400
        %v2410 = vor.u32 %v2408, %v2409
        %v2411 = vshll.u32 2102212464, %v2399
        %v2412 = vshrl.u32 920167782, %v2400
        %v2413 = vor.u32 %v2411, %v2412
        %v2414 = vshll.u32 920167782, %v2399
        %v2415 = vshrl.u32 1326507024, %v2400
        %v2416 = vor.u32 %v2414, %v2415
        %vm2417 = vcmp.lt.s32.totalorder %v2398, 1
        %vm2418 = vcmp.lt.s32.totalorder %v2398, 2
        %vm2419 = vcmp.lt.s32.totalorder %v2398, 3
        %vm2420 = vcmp.lt.s32.totalorder %v2398, 4
        %v2421 = vsel %vm2417, %v2401, %v2404
        %v2422 = vsel %vm2420, %v2410, 2102212464
        %v2423 = vsel %vm2419, %v2407, %v2422
        %v2424 = vsel %vm2418, %v2421, %v2423
        %v2425 = vsel %vm2417, %v2404, %v2407
        %v2426 = vsel %vm2420, %v2413, 920167782
        %v2427 = vsel %vm2419, %v2410, %v2426
        %v2428 = vsel %vm2418, %v2425, %v2427
        %v2429 = vsel %vm2417, %v2407, %v2410
        %v2430 = vsel %vm2420, %v2416, 1326507024
        %v2431 = vsel %vm2419, %v2413, %v2430
        %v2432 = vsel %vm2418, %v2429, %v2431
        %v2433 = vshll.u32 %v2393, 8
        %v2434 = vand.u32 %v2433, 65535
        %v2435 = vshrl.u32 %v2433, 16
        %v2436 = vand.u32 %v2432, 65535
        %v2437 = vshrl.u32 %v2432, 16
        %v2438 = vmul.u32 %v2434, %v2436
        %v2439 = vmul.u32 %v2434, %v2437
        %v2440 = vmul.u32 %v2435, %v2436
        %v2441 = vmul.u32 %v2435, %v2437
        %v2442 = vshll.u32 %v2439, 16
        %v2443 = vshrl.u32 %v2439, 16
        %v2444 = vshll.u32 %v2440, 16
        %v2445 = vshrl.u32 %v2440, 16
        %vm2446 = vc.u32 %v2438, %v2442
        %v2447 = vsel %vm2446, 1, 0
        %v2448 = vadd.s32 %v2438, %v2442
        %v2449 = vadd.s32 %v2441, %v2447
        %vm2450 = vc.u32 %v2448, %v2444
        %v2451 = vsel %vm2450, 1, 0
        %v2452 = vadd.s32 %v2448, %v2444
        %v2453 = vadd.s32 %v2449, %v2451
        %v2454 = vadd.s32 %v2453, %v2443
        %v2455 = vadd.s32 %v2454, %v2445
        %v2456 = vand.u32 %v2433, 65535
        %v2457 = vshrl.u32 %v2433, 16
        %v2458 = vand.u32 %v2428, 65535
        %v2459 = vshrl.u32 %v2428, 16
        %v2460 = vmul.u32 %v2456, %v2458
        %v2461 = vmul.u32 %v2456, %v2459
        %v2462 = vmul.u32 %v2457, %v2458
        %v2463 = vmul.u32 %v2457, %v2459
        %v2464 = vshll.u32 %v2461, 16
        %v2465 = vshrl.u32 %v2461, 16
        %v2466 = vshll.u32 %v2462, 16
        %v2467 = vshrl.u32 %v2462, 16
        %vm2468 = vc.u32 %v2460, %v2464
        %v2469 = vsel %vm2468, 1, 0
        %v2470 = vadd.s32 %v2460, %v2464
        %v2471 = vadd.s32 %v2463, %v2469
        %vm2472 = vc.u32 %v2470, %v2466
        %v2473 = vsel %vm2472, 1, 0
        %v2474 = vadd.s32 %v2470, %v2466
        %v2475 = vadd.s32 %v2471, %v2473
        %v2476 = vadd.s32 %v2475, %v2465
        %v2477 = vadd.s32 %v2476, %v2467
        %v2478 = vmul.u32 %v2433, %v2424
        %v2479 = vadd.s32 %v2455, %v2474
        %vm2480 = vc.u32 %v2455, %v2474
        %v2481 = vadd.s32 %v2477, 1
        %v2482 = vsel %vm2480, %v2481, %v2477
        %v2483 = vadd.s32 %v2478, %v2482
        %v2484 = vadd.s32 %v2483, 536870912
        %v2485 = vshrl.u32 %v2484, 30
        %v2486 = vshll.u32 %v2485, 30
        %v2487 = vsub.s32 %v2483, %v2486
        %vm2488 = vcmp.lt.s32.totalorder %v2487, 0
        %v2489 = vsub.s32 0, %v2487
        %v2490 = vsel %vm2488, %v2489, %v2487
        %v2491 = vclz %v2490
        %v2492 = vsub.s32 %v2491, 2
        %vm2493 = vcmp.gt.s32.totalorder 0, %v2492
        %v2494 = vsel %vm2493, 0, %v2492
        %v2495 = vsub.s32 32, %v2494
        %v2496 = vshll.u32 %v2487, %v2494
        %v2497 = vshrl.u32 %v2479, %v2495
        %v2498 = vor.u32 %v2496, %v2497
        %v2499 = vsub.s32 4294967266, %v2494
        %v2500 = vadd.s32 %v2499, 127
        %v2501 = vshll.u32 %v2500, 23
        %v2502 = vor.u32 4788187, %v2501
        %v2503 = vand.u32 2147483647, %v2502
        %v2505 = vcvt.s32.f32 %v2498
        %v2506 = vmul.f32 %v2505, %v2503
        %v2507 = vxor.u32 %v2506, 2147483648
        %v2508 = vsel %vm2387, %v2507, %v2506
        %v2509 = vsub.s32 4, %v2485
        %v2510 = vsel %vm2387, %v2509, %v2485
        %v2511 = vsel %vm2386, %v367, %v2508
        %v2512 = vsel %vm2386, 0, %v2510
        %v2513 = vmul.f32 %v2511, %v2511
        %v2514 = vmul.f32 %v2513, -0.001358992
        %v2515 = vadd.f32 %v2514, 0.041655596
        %v2516 = vmul.f32 %v2513, %v2515
        %v2517 = vadd.f32 %v2516, -0.4999988
        %v2518 = vmul.f32 %v2513, %v2517
        %v2519 = vadd.f32 1.0, %v2518
        %v2520 = vmul.f32 %v2511, %v2511
        %v2521 = vmul.f32 %v2520, -0.00019511016
        %v2522 = vadd.f32 %v2521, 0.008332121
        %v2523 = vmul.f32 %v2520, %v2522
        %v2524 = vadd.f32 %v2523, -0.16666654
        %v2525 = vmul.f32 %v2520, %v2524
        %v2526 = vadd.f32 %v2525, 1.0
        %v2527 = vmul.f32 %v2526, %v2511
        %vm2528 = vweird.f32 %v367
        %v2529 = vadd.s32 %v2512, 3
        %v2530 = vand.u32 %v2529, 3
        %vm2531 = vcmp.lt.s32.totalorder %v2530, 2
        %vm2532 = vcmp.eq.s32.totalorder %v2530, 0
        %v2533 = vxor.u32 %v2527, 2147483648
        %v2534 = vsel %vm2532, %v2519, %v2533
        %vm2535 = vcmp.eq.s32.totalorder %v2530, 2
        %v2536 = vxor.u32 %v2519, 2147483648
        %v2537 = vsel %vm2535, %v2536, %v2527
        %v2538 = vsel %vm2531, %v2534, %v2537
        %v2539 = vsel %vm2528, nan, %v2538
        %v2540 = vand.u32 2147483647, %v368
        %vm2541 = vcmp.le.f32.partialorder %v2540, 0.7853982
        %vm2542 = vcmp.lt.s32.totalorder %v368, 0
        %v2543 = vand.u32 %v368, 2139095040
        %v2544 = vshrl.u32 %v2543, 23
        %v2545 = vsub.s32 %v2544, 127
        %v2546 = vand.u32 2147483647, %v368
        %v2547 = vand.u32 %v2546, 8388607
        %v2548 = vor.u32 %v2547, 8388608
        %v2549 = vsub.s32 0, %v2548
        %v2550 = vadd.s32 %v2545, 1
        %vm2551 = vcmp.gt.s32.totalorder %v2550, 0
        %v2552 = vsel %vm2551, %v2550, 0
        %v2553 = vshrl.u32 %v2552, 5
        %v2554 = vand.u32 %v2552, 31
        %v2555 = vsub.s32 32, %v2554
        %v2556 = vshrl.u32 683565275, %v2555
        %v2557 = vshll.u32 683565275, %v2554
        %v2558 = vshrl.u32 2475754826, %v2555
        %v2559 = vor.u32 %v2557, %v2558
        %v2560 = vshll.u32 2475754826, %v2554
        %v2561 = vshrl.u32 2131351028, %v2555
        %v2562 = vor.u32 %v2560, %v2561
        %v2563 = vshll.u32 2131351028, %v2554
        %v2564 = vshrl.u32 2102212464, %v2555
        %v2565 = vor.u32 %v2563, %v2564
        %v2566 = vshll.u32 2102212464, %v2554
        %v2567 = vshrl.u32 920167782, %v2555
        %v2568 = vor.u32 %v2566, %v2567
        %v2569 = vshll.u32 920167782, %v2554
        %v2570 = vshrl.u32 1326507024, %v2555
        %v2571 = vor.u32 %v2569, %v2570
        %vm2572 = vcmp.lt.s32.totalorder %v2553, 1
        %vm2573 = vcmp.lt.s32.totalorder %v2553, 2
        %vm2574 = vcmp.lt.s32.totalorder %v2553, 3
        %vm2575 = vcmp.lt.s32.totalorder %v2553, 4
        %v2576 = vsel %vm2572, %v2556, %v2559
        %v2577 = vsel %vm2575, %v2565, 2102212464
        %v2578 = vsel %vm2574, %v2562, %v2577
        %v2579 = vsel %vm2573, %v2576, %v2578
        %v2580 = vsel %vm2572, %v2559, %v2562
        %v2581 = vsel %vm2575, %v2568, 920167782
        %v2582 = vsel %vm2574, %v2565, %v2581
        %v2583 = vsel %vm2573, %v2580, %v2582
        %v2584 = vsel %vm2572, %v2562, %v2565
        %v2585 = vsel %vm2575, %v2571, 1326507024
        %v2586 = vsel %vm2574, %v2568, %v2585
        %v2587 = vsel %vm2573, %v2584, %v2586
        %v2588 = vshll.u32 %v2548, 8
        %v2589 = vand.u32 %v2588, 65535
        %v2590 = vshrl.u32 %v2588, 16
        %v2591 = vand.u32 %v2587, 65535
        %v2592 = vshrl.u32 %v2587, 16
        %v2593 = vmul.u32 %v2589, %v2591
        %v2594 = vmul.u32 %v2589, %v2592
        %v2595 = vmul.u32 %v2590, %v2591
        %v2596 = vmul.u32 %v2590, %v2592
        %v2597 = vshll.u32 %v2594, 16
        %v2598 = vshrl.u32 %v2594, 16
        %v2599 = vshll.u32 %v2595, 16
        %v2600 = vshrl.u32 %v2595, 16
        %vm2601 = vc.u32 %v2593, %v2597
        %v2602 = vsel %vm2601, 1, 0
        %v2603 = vadd.s32 %v2593, %v2597
        %v2604 = vadd.s32 %v2596, %v2602
        %vm2605 = vc.u32 %v2603, %v2599
        %v2606 = vsel %vm2605, 1, 0
        %v2607 = vadd.s32 %v2603, %v2599
        %v2608 = vadd.s32 %v2604, %v2606
        %v2609 = vadd.s32 %v2608, %v2598
        %v2610 = vadd.s32 %v2609, %v2600
        %v2611 = vand.u32 %v2588, 65535
        %v2612 = vshrl.u32 %v2588, 16
        %v2613 = vand.u32 %v2583, 65535
        %v2614 = vshrl.u32 %v2583, 16
        %v2615 = vmul.u32 %v2611, %v2613
        %v2616 = vmul.u32 %v2611, %v2614
        %v2617 = vmul.u32 %v2612, %v2613
        %v2618 = vmul.u32 %v2612, %v2614
        %v2619 = vshll.u32 %v2616, 16
        %v2620 = vshrl.u32 %v2616, 16
        %v2621 = vshll.u32 %v2617, 16
        %v2622 = vshrl.u32 %v2617, 16
        %vm2623 = vc.u32 %v2615, %v2619
        %v2624 = vsel %vm2623, 1, 0
        %v2625 = vadd.s32 %v2615, %v2619
        %v2626 = vadd.s32 %v2618, %v2624
        %vm2627 = vc.u32 %v2625, %v2621
        %v2628 = vsel %vm2627, 1, 0
        %v2629 = vadd.s32 %v2625, %v2621
        %v2630 = vadd.s32 %v2626, %v2628
        %v2631 = vadd.s32 %v2630, %v2620
        %v2632 = vadd.s32 %v2631, %v2622
        %v2633 = vmul.u32 %v2588, %v2579
        %v2634 = vadd.s32 %v2610, %v2629
        %vm2635 = vc.u32 %v2610, %v2629
        %v2636 = vadd.s32 %v2632, 1
        %v2637 = vsel %vm2635, %v2636, %v2632
        %v2638 = vadd.s32 %v2633, %v2637
        %v2639 = vadd.s32 %v2638, 536870912
        %v2640 = vshrl.u32 %v2639, 30
        %v2641 = vshll.u32 %v2640, 30
        %v2642 = vsub.s32 %v2638, %v2641
        %vm2643 = vcmp.lt.s32.totalorder %v2642, 0
        %v2644 = vsub.s32 0, %v2642
        %v2645 = vsel %vm2643, %v2644, %v2642
        %v2646 = vclz %v2645
        %v2647 = vsub.s32 %v2646, 2
        %vm2648 = vcmp.gt.s32.totalorder 0, %v2647
        %v2649 = vsel %vm2648, 0, %v2647
        %v2650 = vsub.s32 32, %v2649
        %v2651 = vshll.u32 %v2642, %v2649
        %v2652 = vshrl.u32 %v2634, %v2650
        %v2653 = vor.u32 %v2651, %v2652
        %v2654 = vsub.s32 4294967266, %v2649
        %v2655 = vadd.s32 %v2654, 127
        %v2656 = vshll.u32 %v2655, 23
        %v2657 = vor.u32 4788187, %v2656
        %v2658 = vand.u32 2147483647, %v2657
        %v2660 = vcvt.s32.f32 %v2653
        %v2661 = vmul.f32 %v2660, %v2658
        %v2662 = vxor.u32 %v2661, 2147483648
        %v2663 = vsel %vm2542, %v2662, %v2661
        %v2664 = vsub.s32 4, %v2640
        %v2665 = vsel %vm2542, %v2664, %v2640
        %v2666 = vsel %vm2541, %v368, %v2663
        %v2667 = vsel %vm2541, 0, %v2665
        %v2668 = vmul.f32 %v2666, %v2666
        %v2669 = vmul.f32 %v2668, -0.001358992
        %v2670 = vadd.f32 %v2669, 0.041655596
        %v2671 = vmul.f32 %v2668, %v2670
        %v2672 = vadd.f32 %v2671, -0.4999988
        %v2673 = vmul.f32 %v2668, %v2672
        %v2674 = vadd.f32 1.0, %v2673
        %v2675 = vmul.f32 %v2666, %v2666
        %v2676 = vmul.f32 %v2675, -0.00019511016
        %v2677 = vadd.f32 %v2676, 0.008332121
        %v2678 = vmul.f32 %v2675, %v2677
        %v2679 = vadd.f32 %v2678, -0.16666654
        %v2680 = vmul.f32 %v2675, %v2679
        %v2681 = vadd.f32 %v2680, 1.0
        %v2682 = vmul.f32 %v2681, %v2666
        %vm2683 = vweird.f32 %v368
        %v2684 = vadd.s32 %v2667, 3
        %v2685 = vand.u32 %v2684, 3
        %vm2686 = vcmp.lt.s32.totalorder %v2685, 2
        %vm2687 = vcmp.eq.s32.totalorder %v2685, 0
        %v2688 = vxor.u32 %v2682, 2147483648
        %v2689 = vsel %vm2687, %v2674, %v2688
        %vm2690 = vcmp.eq.s32.totalorder %v2685, 2
        %v2691 = vxor.u32 %v2674, 2147483648
        %v2692 = vsel %vm2690, %v2691, %v2682
        %v2693 = vsel %vm2686, %v2689, %v2692
        %v2694 = vsel %vm2683, nan, %v2693
        %v2695 = vand.u32 2147483647, %v369
        %vm2696 = vcmp.le.f32.partialorder %v2695, 0.7853982
        %vm2697 = vcmp.lt.s32.totalorder %v369, 0
        %v2698 = vand.u32 %v369, 2139095040
        %v2699 = vshrl.u32 %v2698, 23
        %v2700 = vsub.s32 %v2699, 127
        %v2701 = vand.u32 2147483647, %v369
        %v2702 = vand.u32 %v2701, 8388607
        %v2703 = vor.u32 %v2702, 8388608
        %v2704 = vsub.s32 0, %v2703
        %v2705 = vadd.s32 %v2700, 1
        %vm2706 = vcmp.gt.s32.totalorder %v2705, 0
        %v2707 = vsel %vm2706, %v2705, 0
        %v2708 = vshrl.u32 %v2707, 5
        %v2709 = vand.u32 %v2707, 31
        %v2710 = vsub.s32 32, %v2709
        %v2711 = vshrl.u32 683565275, %v2710
        %v2712 = vshll.u32 683565275, %v2709
        %v2713 = vshrl.u32 2475754826, %v2710
        %v2714 = vor.u32 %v2712, %v2713
        %v2715 = vshll.u32 2475754826, %v2709
        %v2716 = vshrl.u32 2131351028, %v2710
        %v2717 = vor.u32 %v2715, %v2716
        %v2718 = vshll.u32 2131351028, %v2709
        %v2719 = vshrl.u32 2102212464, %v2710
        %v2720 = vor.u32 %v2718, %v2719
        %v2721 = vshll.u32 2102212464, %v2709
        %v2722 = vshrl.u32 920167782, %v2710
        %v2723 = vor.u32 %v2721, %v2722
        %v2724 = vshll.u32 920167782, %v2709
        %v2725 = vshrl.u32 1326507024, %v2710
        %v2726 = vor.u32 %v2724, %v2725
        %vm2727 = vcmp.lt.s32.totalorder %v2708, 1
        %vm2728 = vcmp.lt.s32.totalorder %v2708, 2
        %vm2729 = vcmp.lt.s32.totalorder %v2708, 3
        %vm2730 = vcmp.lt.s32.totalorder %v2708, 4
        %v2731 = vsel %vm2727, %v2711, %v2714
        %v2732 = vsel %vm2730, %v2720, 2102212464
        %v2733 = vsel %vm2729, %v2717, %v2732
        %v2734 = vsel %vm2728, %v2731, %v2733
        %v2735 = vsel %vm2727, %v2714, %v2717
        %v2736 = vsel %vm2730, %v2723, 920167782
        %v2737 = vsel %vm2729, %v2720, %v2736
        %v2738 = vsel %vm2728, %v2735, %v2737
        %v2739 = vsel %vm2727, %v2717, %v2720
        %v2740 = vsel %vm2730, %v2726, 1326507024
        %v2741 = vsel %vm2729, %v2723, %v2740
        %v2742 = vsel %vm2728, %v2739, %v2741
        %v2743 = vshll.u32 %v2703, 8
        %v2744 = vand.u32 %v2743, 65535
        %v2745 = vshrl.u32 %v2743, 16
        %v2746 = vand.u32 %v2742, 65535
        %v2747 = vshrl.u32 %v2742, 16
        %v2748 = vmul.u32 %v2744, %v2746
        %v2749 = vmul.u32 %v2744, %v2747
        %v2750 = vmul.u32 %v2745, %v2746
        %v2751 = vmul.u32 %v2745, %v2747
        %v2752 = vshll.u32 %v2749, 16
        %v2753 = vshrl.u32 %v2749, 16
        %v2754 = vshll.u32 %v2750, 16
        %v2755 = vshrl.u32 %v2750, 16
        %vm2756 = vc.u32 %v2748, %v2752
        %v2757 = vsel %vm2756, 1, 0
        %v2758 = vadd.s32 %v2748, %v2752
        %v2759 = vadd.s32 %v2751, %v2757
        %vm2760 = vc.u32 %v2758, %v2754
        %v2761 = vsel %vm2760, 1, 0
        %v2762 = vadd.s32 %v2758, %v2754
        %v2763 = vadd.s32 %v2759, %v2761
        %v2764 = vadd.s32 %v2763, %v2753
        %v2765 = vadd.s32 %v2764, %v2755
        %v2766 = vand.u32 %v2743, 65535
        %v2767 = vshrl.u32 %v2743, 16
        %v2768 = vand.u32 %v2738, 65535
        %v2769 = vshrl.u32 %v2738, 16
        %v2770 = vmul.u32 %v2766, %v2768
        %v2771 = vmul.u32 %v2766, %v2769
        %v2772 = vmul.u32 %v2767, %v2768
        %v2773 = vmul.u32 %v2767, %v2769
        %v2774 = vshll.u32 %v2771, 16
        %v2775 = vshrl.u32 %v2771, 16
        %v2776 = vshll.u32 %v2772, 16
        %v2777 = vshrl.u32 %v2772, 16
        %vm2778 = vc.u32 %v2770, %v2774
        %v2779 = vsel %vm2778, 1, 0
        %v2780 = vadd.s32 %v2770, %v2774
        %v2781 = vadd.s32 %v2773, %v2779
        %vm2782 = vc.u32 %v2780, %v2776
        %v2783 = vsel %vm2782, 1, 0
        %v2784 = vadd.s32 %v2780, %v2776
        %v2785 = vadd.s32 %v2781, %v2783
        %v2786 = vadd.s32 %v2785, %v2775
        %v2787 = vadd.s32 %v2786, %v2777
        %v2788 = vmul.u32 %v2743, %v2734
        %v2789 = vadd.s32 %v2765, %v2784
        %vm2790 = vc.u32 %v2765, %v2784
        %v2791 = vadd.s32 %v2787, 1
        %v2792 = vsel %vm2790, %v2791, %v2787
        %v2793 = vadd.s32 %v2788, %v2792
        %v2794 = vadd.s32 %v2793, 536870912
        %v2795 = vshrl.u32 %v2794, 30
        %v2796 = vshll.u32 %v2795, 30
        %v2797 = vsub.s32 %v2793, %v2796
        %vm2798 = vcmp.lt.s32.totalorder %v2797, 0
        %v2799 = vsub.s32 0, %v2797
        %v2800 = vsel %vm2798, %v2799, %v2797
        %v2801 = vclz %v2800
        %v2802 = vsub.s32 %v2801, 2
        %vm2803 = vcmp.gt.s32.totalorder 0, %v2802
        %v2804 = vsel %vm2803, 0, %v2802
        %v2805 = vsub.s32 32, %v2804
        %v2806 = vshll.u32 %v2797, %v2804
        %v2807 = vshrl.u32 %v2789, %v2805
        %v2808 = vor.u32 %v2806, %v2807
        %v2809 = vsub.s32 4294967266, %v2804
        %v2810 = vadd.s32 %v2809, 127
        %v2811 = vshll.u32 %v2810, 23
        %v2812 = vor.u32 4788187, %v2811
        %v2813 = vand.u32 2147483647, %v2812
        %v2815 = vcvt.s32.f32 %v2808
        %v2816 = vmul.f32 %v2815, %v2813
        %v2817 = vxor.u32 %v2816, 2147483648
        %v2818 = vsel %vm2697, %v2817, %v2816
        %v2819 = vsub.s32 4, %v2795
        %v2820 = vsel %vm2697, %v2819, %v2795
        %v2821 = vsel %vm2696, %v369, %v2818
        %v2822 = vsel %vm2696, 0, %v2820
        %v2823 = vmul.f32 %v2821, %v2821
        %v2824 = vmul.f32 %v2823, -0.001358992
        %v2825 = vadd.f32 %v2824, 0.041655596
        %v2826 = vmul.f32 %v2823, %v2825
        %v2827 = vadd.f32 %v2826, -0.4999988
        %v2828 = vmul.f32 %v2823, %v2827
        %v2829 = vadd.f32 1.0, %v2828
        %v2830 = vmul.f32 %v2821, %v2821
        %v2831 = vmul.f32 %v2830, -0.00019511016
        %v2832 = vadd.f32 %v2831, 0.008332121
        %v2833 = vmul.f32 %v2830, %v2832
        %v2834 = vadd.f32 %v2833, -0.16666654
        %v2835 = vmul.f32 %v2830, %v2834
        %v2836 = vadd.f32 %v2835, 1.0
        %v2837 = vmul.f32 %v2836, %v2821
        %vm2838 = vweird.f32 %v369
        %v2839 = vadd.s32 %v2822, 3
        %v2840 = vand.u32 %v2839, 3
        %vm2841 = vcmp.lt.s32.totalorder %v2840, 2
        %vm2842 = vcmp.eq.s32.totalorder %v2840, 0
        %v2843 = vxor.u32 %v2837, 2147483648
        %v2844 = vsel %vm2842, %v2829, %v2843
        %vm2845 = vcmp.eq.s32.totalorder %v2840, 2
        %v2846 = vxor.u32 %v2829, 2147483648
        %v2847 = vsel %vm2845, %v2846, %v2837
        %v2848 = vsel %vm2841, %v2844, %v2847
        %v2849 = vsel %vm2838, nan, %v2848
        %2850 = vst [vmem:[%s164] sm:$0xff] %v524
        %2851 = vst [vmem:[%s164 + $0x8] sm:$0xff] %v679
        %2852 = vst [vmem:[%s164 + $0x10] sm:$0xff] %v834
        %2853 = vst [vmem:[%s164 + $0x18] sm:$0xff] %v989
        %2854 = vst [vmem:[%s164 + $0x20] sm:$0xff] %v1144
        %2855 = vst [vmem:[%s164 + $0x28] sm:$0xff] %v1299
        %2856 = vst [vmem:[%s164 + $0x30] sm:$0xff] %v1454
        %2857 = vst [vmem:[%s164 + $0x38] sm:$0xff] %v1609
        %2858 = vst [vmem:[%s164 + $0x40] sm:$0xff] %v1764
        %2859 = vst [vmem:[%s164 + $0x48] sm:$0xff] %v1919
        %2860 = vst [vmem:[%s164 + $0x50] sm:$0xff] %v2074
        %2861 = vst [vmem:[%s164 + $0x58] sm:$0xff] %v2229
        %2862 = vst [vmem:[%s164 + $0x60] sm:$0xff] %v2384
        %2863 = vst [vmem:[%s164 + $0x68] sm:$0xff] %v2539
        %2864 = vst [vmem:[%s164 + $0x70] sm:$0xff] %v2694
        %2865 = vst [vmem:[%s164 + $0x78] sm:$0xff] %v2849
        %s2866 = sand.u32 %s93, 1
        %s2867 = scalar_lea.sflag [#allocation3], %s2866
        %s2868 = sand.u32 %s93, 1
        %s2869 = smul.addr %s2868, 128
        %s2870 = scalar_lea.vmem [#allocation2], %s2869
        // Predicated region
        $region33: #{tpu_custom_call.1} parent=31 // pred_check
          %p2871 = pneg %p103
        $region34: #{tpu_custom_call.1} parent=31 // pred_check_branch
          %2873 = sbr.rel (%p2871) target = $region36
        $region35: #{tpu_custom_call.1} parent=31 // pred_region
          %s2874 = smul.u32 16, %s17
          %2876 = vsyncadd %s2867, 0
          %s2877 = smul.addr %s2874, 8
          %s2878 = scalar_lea.hbm %s3, %s2877
          %s2879 = sshll.u32 %s2870, 4
          %s2880 = int_to_ptr.vmem [resolvable:$true] %s2879
          %s2881 = sshll.u32 %s2878, 4
          %s2882 = int_to_ptr.hbm [resolvable:$true] %s2881
          %2887 = dma.vmem_to_hbm [thread:$0]  %s2880, 2048, %s2882, %s2867, 128, 128, 8
        $region36: #{tpu_custom_call.1} parent=31 // pred_fallthru
          _
      $region32: #{tpu_custom_call.1} parent=5 // pred_fallthru
        _
      %p2888 = scmp.le.s32.totalorder 2, %s12
      // Predicated region
      $region37: #{tpu_custom_call.1} parent=5 // pred_check
        %p2889 = pneg %p2888
      $region38: #{tpu_custom_call.1} parent=5 // pred_check_branch
        %2891 = sbr.rel (%p2889) target = $region40
      $region39: #{tpu_custom_call.1} parent=5 // pred_region
        %s2892 = ssub.s32 %s12, 2
        // Predicated region
        $region41: #{tpu_custom_call.1} parent=39 // pred_check
          %p2893 = pneg %p109
        $region42: #{tpu_custom_call.1} parent=39 // pred_check_branch
          %2895 = sbr.rel (%p2893) target = $region44
        $region43: #{tpu_custom_call.1} parent=39 // pred_region
          %s2896 = sand.u32 %s94, 1
          %s2897 = scalar_lea.sflag [#allocation3], %s2896
          %s2898 = sand.u32 %s94, 1
          %s2899 = smul.addr %s2898, 128
          %s2900 = scalar_lea.vmem [#allocation2], %s2899
          %2902 = dma.done %s2897, 2048
        $region44: #{tpu_custom_call.1} parent=39 // pred_fallthru
          _
      $region40: #{tpu_custom_call.1} parent=5 // pred_fallthru
        _
    $region6: #{tpu_custom_call.1} parent=1 // loop_footer
      %s16 = sadd.s32 1, %s12
    $region7: #{tpu_custom_call.1} parent=1 // loop_footer_branch
      %11 = sbr.rel target = $region3
    $region8: #{tpu_custom_call.1} parent=1 // loop_exit
      _
    %2903 = vsyncpa [#allocation3], 1
    %s2904 = scalar_lea.sflag [#allocation3], 1
    %2905 = vsyncpa %s2904, 1

</llo_original>
